<compile_context>
chip_gen: v7x
topology: tpu7x:2x2x1
jax: 0.10.0
libtpu: 0.0.40
codegen_flags: <defaults>
</compile_context>

<pallas_src>
import functools

import numpy as np
import jax
import jax.numpy as jnp
from jax.experimental import pallas as pl
from jax.experimental.pallas import tpu as pltpu


def _round_up(x, m):
    return (x + m - 1) // m * m


# --------------------------------------------------------------------------
# One-time parameter preparation (hoisted out of the per-step forward)
# --------------------------------------------------------------------------

def _bn_affine(bn, eps=1e-5):
    inv = jax.lax.rsqrt(bn['var'] + eps)
    scale = bn['gamma'] * inv
    shift = bn['beta'] - bn['mean'] * scale
    return scale, shift


def _tap_weight_matrices(w_oihw, k_pad, nc, col_off):
    """(Cout, Cin, 3, 3) -> (3, k_pad, nc) f32: tap kh's kw/cin weights go to
    contraction rows [kw*Cin, (kw+1)*Cin) and output cols [col_off, col_off+Cout)."""
    cout, cin, kh, kw = w_oihw.shape
    assert (kh, kw) == (3, 3)
    w = jnp.transpose(w_oihw, (2, 3, 1, 0)).reshape(3, 3 * cin, cout)
    wm = jnp.zeros((3, k_pad, nc), jnp.float32)
    return wm.at[:, :3 * cin, col_off:col_off + cout].set(w)


def prepare_block_params(params, eps=1e-5):
    """Fold BN into scale/shift, build bf16 tap matrices, and fuse the shortcut
    (1x1 downsample conv + BN, or identity) into kernel A.  Run ONCE per block,
    outside the jitted forward."""
    c1, cin = params['conv1_w'].shape[:2]
    k1 = _round_up(3 * cin, 128)       # conv1 contraction (3 kw taps merged)
    k2 = _round_up(3 * c1, 128)        # conv2 contraction
    nc = _round_up(2 * c1, 128)        # fused output width: [shortcut | conv1]

    s1, b1 = _bn_affine(params['bn1'], eps)
    s2, b2 = _bn_affine(params['bn2'], eps)

    # conv1 weights -> columns [c1, 2*c1); shortcut -> columns [0, c1).
    w1 = _tap_weight_matrices(params['conv1_w'], k1, nc, col_off=c1)
    if 'ds_w' in params:
        ds_mat = jnp.transpose(params['ds_w'][:, :, 0, 0], (1, 0))     # (cin, c1)
        sd, bd = _bn_affine(params['ds_bn'], eps)
    else:
        # Identity shortcut (module guarantees stride == 1 and cin == c1 here).
        ds_mat = jnp.eye(cin, c1, dtype=jnp.float32)
        sd = jnp.ones((c1,), jnp.float32)
        bd = jnp.zeros((c1,), jnp.float32)
    # Shortcut reads the centre tap (kh=1, kw=1) -> rows [cin, 2*cin) of tap 1.
    w1 = w1.at[1, cin:2 * cin, 0:c1].set(ds_mat)

    scale1 = (jnp.zeros((1, nc), jnp.float32)
              .at[0, 0:c1].set(sd).at[0, c1:2 * c1].set(s1))
    shift1 = (jnp.zeros((1, nc), jnp.float32)
              .at[0, 0:c1].set(bd).at[0, c1:2 * c1].set(b1))

    w2 = _tap_weight_matrices(params['conv2_w'], k2, nc, col_off=0)
    scale2 = jnp.zeros((1, nc), jnp.float32).at[0, 0:c1].set(s2)
    shift2 = jnp.zeros((1, nc), jnp.float32).at[0, 0:c1].set(b2)

    return {'w1': w1.astype(jnp.bfloat16), 'scale1': scale1, 'shift1': shift1,
            'w2': w2.astype(jnp.bfloat16), 'scale2': scale2, 'shift2': shift2}


# --------------------------------------------------------------------------
# Wrapper-side activation layout (bf16, one concat + pad, XLA-fusible)
# --------------------------------------------------------------------------

def _kw_merge(x_nhwc, k_pad, stride):
    """Pad H/W by 1, merge the 3 kw taps into the channel axis (lane-dense
    contraction), phase-split rows by `stride` so per-kh kernel reads are
    unit-stride leading-axis slices.

    (N, H, W, C) -> (N, stride, ceil((H+2)/stride), Wo, k_pad)
    with out[n, kh%s, r, j, kw*C + c] == xpad[n, s*r + kh%s, s*j + kw, c]
    """
    n, h, w, c = x_nhwc.shape
    wo = (w + 2 - 3) // stride + 1
    xp = jnp.pad(x_nhwc, ((0, 0), (1, 1), (1, 1), (0, 0)))
    taps = [xp[:, :, kw:kw + stride * (wo - 1) + 1:stride, :] for kw in range(3)]
    xr = jnp.concatenate(taps, axis=-1)                         # (N, H+2, Wo, 3C)
    xr = jnp.pad(xr, ((0, 0), (0, 0), (0, 0), (0, k_pad - 3 * c)))
    hp = h + 2
    if stride == 1:
        return xr[:, None]                                      # (N, 1, H+2, Wo, K)
    hp2 = _round_up(hp, stride)
    xr = jnp.pad(xr, ((0, 0), (0, hp2 - hp), (0, 0), (0, 0)))
    xr = xr.reshape(n, hp2 // stride, stride, wo, k_pad)
    return jnp.transpose(xr, (0, 2, 1, 3, 4))                   # (N, s, hp2/s, Wo, K)


# --------------------------------------------------------------------------
# Pallas kernels
# --------------------------------------------------------------------------

def _conv1_shortcut_kernel(x_ref, w_ref, scale_ref, shift_ref, o_ref, *,
                           stride, ho, wo, c1):
    """Fused conv1 + BN1 + ReLU and shortcut (+BN).  One grid step = one image.

    x_ref      : (stride, Hph, Wo, K1) bf16  kw-merged, row-phase-split input
    w_ref      : (3, K1, NC)           bf16  per-kh weights (shortcut fused)
    scale/shift: (1, NC)               f32
    o_ref      : (Ho, Wo, NC)          bf16  cols [0,c1)=shortcut, [c1,2c1)=conv1
    """
    k = x_ref.shape[-1]
    nc = o_ref.shape[-1]
    acc = jnp.zeros((ho * wo, nc), jnp.float32)
    for kh in range(3):
        tap = x_ref[kh % stride, kh // stride:kh // stride + ho]   # (Ho, Wo, K1)
        acc = acc + jnp.dot(tap.reshape(ho * wo, k), w_ref[kh],
                            preferred_element_type=jnp.float32)
    y = acc * scale_ref[...] + shift_ref[...]
    col = jax.lax.broadcasted_iota(jnp.int32, (1, nc), 1)
    y = jnp.where(col >= c1, jnp.maximum(y, 0.0), y)   # ReLU only on conv1 cols
    o_ref[...] = y.reshape(ho, wo, nc).astype(o_ref.dtype)


def _conv2_residual_kernel(x_ref, res_ref, w_ref, scale_ref, shift_ref, o_ref, *,
                           ho, wo, c1):
    """Fused conv2 + BN2 + residual add + ReLU.  One grid step = one image.

    x_ref  : (Ho+2, Wo, K2) bf16  kw-merged conv1 activation
    res_ref: (Ho, Wo, NC)   bf16  kernel A output; cols [0, c1) = shortcut
    o_ref  : (Ho, Wo, NC)   f32   cols [0, c1) = block output, rest zero
    """
    k = x_ref.shape[-1]
    nc = o_ref.shape[-1]
    acc = jnp.zeros((ho * wo, nc), jnp.float32)
    for kh in range(3):
        tap = x_ref[kh:kh + ho]                                    # (Ho, Wo, K2)
        acc = acc + jnp.dot(tap.reshape(ho * wo, k), w_ref[kh],
                            preferred_element_type=jnp.float32)
    y = acc * scale_ref[...] + shift_ref[...]
    col = jax.lax.broadcasted_iota(jnp.int32, (1, nc), 1)
    res = res_ref[...].reshape(ho * wo, nc).astype(jnp.float32)
    y = y + jnp.where(col < c1, res, 0.0)                          # masked residual
    o_ref[...] = jnp.maximum(y, 0.0).reshape(ho, wo, nc).astype(o_ref.dtype)


# --------------------------------------------------------------------------
# ResNetBlock forward (matches PyTorch module semantics, eval-mode BN)
# --------------------------------------------------------------------------

def resnet_block_forward(prep, x_nchw, *, stride, out_channels):
    c1 = out_channels
    n, cin, h, w = x_nchw.shape
    ho = (h + 2 - 3) // stride + 1
    wo = (w + 2 - 3) // stride + 1
    k1 = prep['w1'].shape[1]
    k2 = prep['w2'].shape[1]
    nc = prep['w1'].shape[2]

    x = jnp.transpose(x_nchw, (0, 2, 3, 1)).astype(jnp.bfloat16)   # NCHW->NHWC bf16

    # ---- kernel A: conv1 + BN1 + ReLU and the shortcut branch, one call ----
    xr1 = _kw_merge(x, k1, stride)                   # (N, s, Hph, Wo, K1)
    hph = xr1.shape[2]
    kernel_a = functools.partial(_conv1_shortcut_kernel,
                                 stride=stride, ho=ho, wo=wo, c1=c1)
    inter = pl.pallas_call(
        kernel_a,
        out_shape=jax.ShapeDtypeStruct((n, ho, wo, nc), jnp.bfloat16),
        grid=(n,),
        in_specs=[
            pl.BlockSpec((None, stride, hph, wo, k1), lambda i: (i, 0, 0, 0, 0)),
            pl.BlockSpec((3, k1, nc), lambda i: (0, 0, 0)),
            pl.BlockSpec((1, nc), lambda i: (0, 0)),
            pl.BlockSpec((1, nc), lambda i: (0, 0)),
        ],
        out_specs=pl.BlockSpec((None, ho, wo, nc), lambda i: (i, 0, 0, 0)),
        compiler_params=pltpu.CompilerParams(dimension_semantics=("parallel",)),
    )(xr1, prep['w1'], prep['scale1'], prep['shift1'])

    # ---- kernel B: conv2 + BN2 + residual add + ReLU ----
    xr2 = _kw_merge(inter[..., c1:2 * c1], k2, 1)[:, 0]   # (N, Ho+2, Wo, K2)
    kernel_b = functools.partial(_conv2_residual_kernel, ho=ho, wo=wo, c1=c1)
    out = pl.pallas_call(
        kernel_b,
        out_shape=jax.ShapeDtypeStruct((n, ho, wo, nc), jnp.float32),
        grid=(n,),
        in_specs=[
            pl.BlockSpec((None, ho + 2, wo, k2), lambda i: (i, 0, 0, 0)),
            pl.BlockSpec((None, ho, wo, nc), lambda i: (i, 0, 0, 0)),
            pl.BlockSpec((3, k2, nc), lambda i: (0, 0, 0)),
            pl.BlockSpec((1, nc), lambda i: (0, 0)),
            pl.BlockSpec((1, nc), lambda i: (0, 0)),
        ],
        out_specs=pl.BlockSpec((None, ho, wo, nc), lambda i: (i, 0, 0, 0)),
        compiler_params=pltpu.CompilerParams(dimension_semantics=("parallel",)),
    )(xr2, inter, prep['w2'], prep['scale2'], prep['shift2'])

    return jnp.transpose(out[..., :c1], (0, 3, 1, 2))     # NHWC -> NCHW, f32


# --------------------------------------------------------------------------
# Pure-JAX reference (same eval-mode BN) and deterministic params
# --------------------------------------------------------------------------

def _reference_block(params, x_nchw, stride):
    def conv(x, w, s, p):
        return jax.lax.conv_general_dilated(
            x, w, window_strides=(s, s), padding=((p, p), (p, p)),
            dimension_numbers=('NCHW', 'OIHW', 'NCHW'))

    def bn(x, bnp):
        sc, sh = _bn_affine(bnp)
        return x * sc[None, :, None, None] + sh[None, :, None, None]

    out = jax.nn.relu(bn(conv(x_nchw, params['conv1_w'], stride, 1), params['bn1']))
    out = bn(conv(out, params['conv2_w'], 1, 1), params['bn2'])
    if 'ds_w' in params:
        sc = bn(conv(x_nchw, params['ds_w'], stride, 0), params['ds_bn'])
    else:
        sc = x_nchw
    return jax.nn.relu(out + sc)


def init_block_params(key, in_channels, out_channels, stride):
    ks = jax.random.split(key, 6)

    def conv_w(k, cout, cin, ksz):
        fan_in = cin * ksz * ksz
        return jax.random.normal(k, (cout, cin, ksz, ksz),
                                 jnp.float32) * np.sqrt(2.0 / fan_in)

    def bn_p(k, c):
        k1, k2, k3, k4 = jax.random.split(k, 4)
        return {'gamma': 1.0 + 0.1 * jax.random.normal(k1, (c,), jnp.float32),
                'beta': 0.1 * jax.random.normal(k2, (c,), jnp.float32),
                'mean': 0.1 * jax.random.normal(k3, (c,), jnp.float32),
                'var': 1.0 + 0.1 * jax.random.uniform(k4, (c,), jnp.float32)}

    p = {'conv1_w': conv_w(ks[0], out_channels, in_channels, 3),
         'bn1': bn_p(ks[1], out_channels),
         'conv2_w': conv_w(ks[2], out_channels, out_channels, 3),
         'bn2': bn_p(ks[3], out_channels)}
    if stride != 1 or in_channels != out_channels:
        p['ds_w'] = conv_w(ks[4], out_channels, in_channels, 1)
        p['ds_bn'] = bn_p(ks[5], out_channels)
    return p


# --------------------------------------------------------------------------

if __name__ == "__main__":
    key = jax.random.PRNGKey(0)
    k_p1, k_p2, k_x = jax.random.split(key, 3)

    # bf16 MXU operands + bf16 intermediate storage -> ~1e-2 deviations vs the
    # f32 reference; tolerances are chosen accordingly.
    RTOL, ATOL = 5e-2, 1e-1

    # Block 1: downsample path (stride 2, channel expansion 32 -> 64).
    p_down = init_block_params(k_p1, 32, 64, 2)
    prep_down = prepare_block_params(p_down)                  # one-time prep
    x = jax.random.normal(k_x, (2, 32, 16, 16), jnp.float32)
    fwd_down = jax.jit(functools.partial(resnet_block_forward,
                                         stride=2, out_channels=64))
    out_down = jax.block_until_ready(fwd_down(prep_down, x))
    assert out_down.shape == (2, 64, 8, 8), out_down.shape
    assert bool(jnp.all(jnp.isfinite(out_down)))
    ref_down = _reference_block(p_down, x, 2)
    np.testing.assert_allclose(np.asarray(out_down), np.asarray(ref_down),
                               rtol=RTOL, atol=ATOL)

    # Block 2: identity shortcut path (stride 1, 64 -> 64).
    p_id = init_block_params(k_p2, 64, 64, 1)
    prep_id = prepare_block_params(p_id)                      # one-time prep
    x2 = out_down                                             # (2, 64, 8, 8)
    fwd_id = jax.jit(functools.partial(resnet_block_forward,
                                       stride=1, out_channels=64))
    out_id = jax.block_until_ready(fwd_id(prep_id, x2))
    assert out_id.shape == (2, 64, 8, 8), out_id.shape
    assert bool(jnp.all(jnp.isfinite(out_id)))
    ref_id = _reference_block(p_id, x2, 1)
    np.testing.assert_allclose(np.asarray(out_id), np.asarray(ref_id),
                               rtol=RTOL, atol=ATOL)

    print("KERNEL_OK")
</pallas_src>

<mosaic_0001>
module attributes {stable_mosaic.version = 11 : i64} {
  func.func @_conv1_shortcut_kernel(%arg0: i32, %arg1: memref<1x2x9x8x128xbf16, #tpu.memory_space<vmem>>, %arg2: memref<3x128x128xbf16, #tpu.memory_space<vmem>>, %arg3: memref<1x128xf32, #tpu.memory_space<vmem>>, %arg4: memref<1x128xf32, #tpu.memory_space<vmem>>, %arg5: memref<1x8x8x128xbf16, #tpu.memory_space<vmem>>) attributes {dimension_semantics = [#tpu.dimension_semantics<parallel>], iteration_bounds = array<i64: 2>, scalar_prefetch = 0 : i64, scratch_operands = 0 : i64, tpu.core_type = #tpu.core_type<tc>, window_params = [{transform_indices = @transform_0, window_bounds = array<i64: 1, 2, 9, 8, 128>}, {pipeline_mode = #tpu.pipeline_mode<synchronous>, transform_indices = @transform_1, window_bounds = array<i64: 3, 128, 128>}, {pipeline_mode = #tpu.pipeline_mode<synchronous>, transform_indices = @transform_2, window_bounds = array<i64: 1, 128>}, {pipeline_mode = #tpu.pipeline_mode<synchronous>, transform_indices = @transform_3, window_bounds = array<i64: 1, 128>}, {transform_indices = @transform_4, window_bounds = array<i64: 1, 8, 8, 128>}]} {
    %cst = arith.constant 0.000000e+00 : f32
    %0 = vector.broadcast %cst : f32 to vector<64x128xf32>
    %c0 = arith.constant 0 : index
    %c0_0 = arith.constant 0 : index
    %c0_1 = arith.constant 0 : index
    %c0_2 = arith.constant 0 : index
    %c0_3 = arith.constant 0 : index
    %1 = vector.load %arg1[%c0, %c0_0, %c0_1, %c0_2, %c0_3] : memref<1x2x9x8x128xbf16, #tpu.memory_space<vmem>>, vector<1x1x8x8x128xbf16>
    %2 = vector.shape_cast %1 : vector<1x1x8x8x128xbf16> to vector<8x8x128xbf16>
    %3 = vector.shape_cast %2 : vector<8x8x128xbf16> to vector<64x128xbf16>
    %c0_4 = arith.constant 0 : index
    %c0_5 = arith.constant 0 : index
    %c0_6 = arith.constant 0 : index
    %4 = vector.load %arg2[%c0_4, %c0_5, %c0_6] : memref<3x128x128xbf16, #tpu.memory_space<vmem>>, vector<1x128x128xbf16>
    %5 = vector.shape_cast %4 : vector<1x128x128xbf16> to vector<128x128xbf16>
    %cst_7 = arith.constant dense<0.000000e+00> : vector<64x128xf32>
    %6 = tpu.matmul %3, %5, %cst_7 {dimension_numbers = #tpu.dot_dimension_numbers<[1], [0], [0], [1], [0, 0, 1, 1], [], []>} : vector<64x128xbf16>, vector<128x128xbf16>, vector<64x128xf32> -> vector<64x128xf32>
    %7 = arith.addf %0, %6 : vector<64x128xf32>
    %c0_8 = arith.constant 0 : index
    %c1 = arith.constant 1 : index
    %c0_9 = arith.constant 0 : index
    %c0_10 = arith.constant 0 : index
    %c0_11 = arith.constant 0 : index
    %8 = vector.load %arg1[%c0_8, %c1, %c0_9, %c0_10, %c0_11] : memref<1x2x9x8x128xbf16, #tpu.memory_space<vmem>>, vector<1x1x8x8x128xbf16>
    %9 = vector.shape_cast %8 : vector<1x1x8x8x128xbf16> to vector<8x8x128xbf16>
    %10 = vector.shape_cast %9 : vector<8x8x128xbf16> to vector<64x128xbf16>
    %c1_12 = arith.constant 1 : index
    %c0_13 = arith.constant 0 : index
    %c0_14 = arith.constant 0 : index
    %11 = vector.load %arg2[%c1_12, %c0_13, %c0_14] : memref<3x128x128xbf16, #tpu.memory_space<vmem>>, vector<1x128x128xbf16>
    %12 = vector.shape_cast %11 : vector<1x128x128xbf16> to vector<128x128xbf16>
    %cst_15 = arith.constant dense<0.000000e+00> : vector<64x128xf32>
    %13 = tpu.matmul %10, %12, %cst_15 {dimension_numbers = #tpu.dot_dimension_numbers<[1], [0], [0], [1], [0, 0, 1, 1], [], []>} : vector<64x128xbf16>, vector<128x128xbf16>, vector<64x128xf32> -> vector<64x128xf32>
    %14 = arith.addf %7, %13 : vector<64x128xf32>
    %c0_16 = arith.constant 0 : index
    %c0_17 = arith.constant 0 : index
    %c1_18 = arith.constant 1 : index
    %c0_19 = arith.constant 0 : index
    %c0_20 = arith.constant 0 : index
    %15 = vector.load %arg1[%c0_16, %c0_17, %c1_18, %c0_19, %c0_20] : memref<1x2x9x8x128xbf16, #tpu.memory_space<vmem>>, vector<1x1x8x8x128xbf16>
    %16 = vector.shape_cast %15 : vector<1x1x8x8x128xbf16> to vector<8x8x128xbf16>
    %17 = vector.shape_cast %16 : vector<8x8x128xbf16> to vector<64x128xbf16>
    %c2 = arith.constant 2 : index
    %c0_21 = arith.constant 0 : index
    %c0_22 = arith.constant 0 : index
    %18 = vector.load %arg2[%c2, %c0_21, %c0_22] : memref<3x128x128xbf16, #tpu.memory_space<vmem>>, vector<1x128x128xbf16>
    %19 = vector.shape_cast %18 : vector<1x128x128xbf16> to vector<128x128xbf16>
    %cst_23 = arith.constant dense<0.000000e+00> : vector<64x128xf32>
    %20 = tpu.matmul %17, %19, %cst_23 {dimension_numbers = #tpu.dot_dimension_numbers<[1], [0], [0], [1], [0, 0, 1, 1], [], []>} : vector<64x128xbf16>, vector<128x128xbf16>, vector<64x128xf32> -> vector<64x128xf32>
    %21 = arith.addf %14, %20 : vector<64x128xf32>
    %c0_24 = arith.constant 0 : index
    %c0_25 = arith.constant 0 : index
    %22 = vector.load %arg3[%c0_24, %c0_25] : memref<1x128xf32, #tpu.memory_space<vmem>>, vector<1x128xf32>
    %23 = vector.broadcast %22 : vector<1x128xf32> to vector<64x128xf32>
    %24 = arith.mulf %21, %23 : vector<64x128xf32>
    %c0_26 = arith.constant 0 : index
    %c0_27 = arith.constant 0 : index
    %25 = vector.load %arg4[%c0_26, %c0_27] : memref<1x128xf32, #tpu.memory_space<vmem>>, vector<1x128xf32>
    %26 = vector.broadcast %25 : vector<1x128xf32> to vector<64x128xf32>
    %27 = arith.addf %24, %26 : vector<64x128xf32>
    %28 = tpu.iota {dimensions = array<i32: 1>} : vector<1x128xi32>
    %c64_i32 = arith.constant 64 : i32
    %29 = vector.broadcast %c64_i32 : i32 to vector<1x128xi32>
    %30 = arith.cmpi sge, %28, %29 : vector<1x128xi32>
    %cst_28 = arith.constant 0.000000e+00 : f32
    %31 = vector.broadcast %cst_28 : f32 to vector<64x128xf32>
    %32 = arith.maximumf %27, %31 : vector<64x128xf32>
    %33 = vector.shape_cast %30 : vector<1x128xi1> to vector<1x128xi1>
    %34 = vector.broadcast %33 : vector<1x128xi1> to vector<64x128xi1>
    %35 = arith.select %34, %32, %27 : vector<64x128xi1>, vector<64x128xf32>
    %36 = vector.shape_cast %35 : vector<64x128xf32> to vector<8x8x128xf32>
    %37 = arith.truncf %36 : vector<8x8x128xf32> to vector<8x8x128xbf16>
    %c0_29 = arith.constant 0 : index
    %c0_30 = arith.constant 0 : index
    %c0_31 = arith.constant 0 : index
    %c0_32 = arith.constant 0 : index
    %38 = vector.load %arg5[%c0_29, %c0_30, %c0_31, %c0_32] : memref<1x8x8x128xbf16, #tpu.memory_space<vmem>>, vector<1x8x8x128xbf16>
    %39 = vector.shape_cast %38 : vector<1x8x8x128xbf16> to vector<8x8x128xbf16>
    %40 = vector.shape_cast %37 : vector<8x8x128xbf16> to vector<1x8x8x128xbf16>
    tpu.vector_store %arg5[%c0_29, %c0_30, %c0_31, %c0_32], %40 {strides = array<i32>} : memref<1x8x8x128xbf16, #tpu.memory_space<vmem>>, vector<1x8x8x128xbf16>,
    return
  }
  func.func @transform_0(%arg0: i32) -> (i32, i32, i32, i32, i32) {
    %c0_i32 = arith.constant 0 : i32
    %c0_i32_0 = arith.constant 0 : i32
    %c0_i32_1 = arith.constant 0 : i32
    %c0_i32_2 = arith.constant 0 : i32
    %c0_i32_3 = arith.constant 0 : i32
    return %arg0, %c0_i32, %c0_i32_0, %c0_i32_1, %c0_i32_2 : i32, i32, i32, i32, i32
  }
  func.func @transform_1(%arg0: i32) -> (i32, i32, i32) {
    %c0_i32 = arith.constant 0 : i32
    %c0_i32_0 = arith.constant 0 : i32
    %c0_i32_1 = arith.constant 0 : i32
    %c0_i32_2 = arith.constant 0 : i32
    return %c0_i32, %c0_i32_0, %c0_i32_1 : i32, i32, i32
  }
  func.func @transform_2(%arg0: i32) -> (i32, i32) {
    %c0_i32 = arith.constant 0 : i32
    %c0_i32_0 = arith.constant 0 : i32
    %c0_i32_1 = arith.constant 0 : i32
    return %c0_i32, %c0_i32_0 : i32, i32
  }
  func.func @transform_3(%arg0: i32) -> (i32, i32) {
    %c0_i32 = arith.constant 0 : i32
    %c0_i32_0 = arith.constant 0 : i32
    %c0_i32_1 = arith.constant 0 : i32
    return %c0_i32, %c0_i32_0 : i32, i32
  }
  func.func @transform_4(%arg0: i32) -> (i32, i32, i32, i32) {
    %c0_i32 = arith.constant 0 : i32
    %c0_i32_0 = arith.constant 0 : i32
    %c0_i32_1 = arith.constant 0 : i32
    %c0_i32_2 = arith.constant 0 : i32
    return %arg0, %c0_i32, %c0_i32_0, %c0_i32_1 : i32, i32, i32, i32
  }
}

module attributes {stable_mosaic.version = 11 : i64} {
  func.func @_conv2_residual_kernel(%arg0: i32, %arg1: memref<1x10x8x256xbf16, #tpu.memory_space<vmem>>, %arg2: memref<1x8x8x128xbf16, #tpu.memory_space<vmem>>, %arg3: memref<3x256x128xbf16, #tpu.memory_space<vmem>>, %arg4: memref<1x128xf32, #tpu.memory_space<vmem>>, %arg5: memref<1x128xf32, #tpu.memory_space<vmem>>, %arg6: memref<1x8x8x128xf32, #tpu.memory_space<vmem>>) attributes {dimension_semantics = [#tpu.dimension_semantics<parallel>], iteration_bounds = array<i64: 2>, scalar_prefetch = 0 : i64, scratch_operands = 0 : i64, tpu.core_type = #tpu.core_type<tc>, window_params = [{transform_indices = @transform_0, window_bounds = array<i64: 1, 10, 8, 256>}, {transform_indices = @transform_1, window_bounds = array<i64: 1, 8, 8, 128>}, {pipeline_mode = #tpu.pipeline_mode<synchronous>, transform_indices = @transform_2, window_bounds = array<i64: 3, 256, 128>}, {pipeline_mode = #tpu.pipeline_mode<synchronous>, transform_indices = @transform_3, window_bounds = array<i64: 1, 128>}, {pipeline_mode = #tpu.pipeline_mode<synchronous>, transform_indices = @transform_4, window_bounds = array<i64: 1, 128>}, {transform_indices = @transform_5, window_bounds = array<i64: 1, 8, 8, 128>}]} {
    %cst = arith.constant 0.000000e+00 : f32
    %0 = vector.broadcast %cst : f32 to vector<64x128xf32>
    %c0 = arith.constant 0 : index
    %c0_0 = arith.constant 0 : index
    %c0_1 = arith.constant 0 : index
    %c0_2 = arith.constant 0 : index
    %1 = vector.load %arg1[%c0, %c0_0, %c0_1, %c0_2] : memref<1x10x8x256xbf16, #tpu.memory_space<vmem>>, vector<1x8x8x256xbf16>
    %2 = vector.shape_cast %1 : vector<1x8x8x256xbf16> to vector<8x8x256xbf16>
    %3 = vector.shape_cast %2 : vector<8x8x256xbf16> to vector<64x256xbf16>
    %c0_3 = arith.constant 0 : index
    %c0_4 = arith.constant 0 : index
    %c0_5 = arith.constant 0 : index
    %4 = vector.load %arg3[%c0_3, %c0_4, %c0_5] : memref<3x256x128xbf16, #tpu.memory_space<vmem>>, vector<1x256x128xbf16>
    %5 = vector.shape_cast %4 : vector<1x256x128xbf16> to vector<256x128xbf16>
    %cst_6 = arith.constant dense<0.000000e+00> : vector<64x128xf32>
    %6 = tpu.matmul %3, %5, %cst_6 {dimension_numbers = #tpu.dot_dimension_numbers<[1], [0], [0], [1], [0, 0, 1, 1], [], []>} : vector<64x256xbf16>, vector<256x128xbf16>, vector<64x128xf32> -> vector<64x128xf32>
    %7 = arith.addf %0, %6 : vector<64x128xf32>
    %c0_7 = arith.constant 0 : index
    %c1 = arith.constant 1 : index
    %c0_8 = arith.constant 0 : index
    %c0_9 = arith.constant 0 : index
    %8 = vector.load %arg1[%c0_7, %c1, %c0_8, %c0_9] : memref<1x10x8x256xbf16, #tpu.memory_space<vmem>>, vector<1x8x8x256xbf16>
    %9 = vector.shape_cast %8 : vector<1x8x8x256xbf16> to vector<8x8x256xbf16>
    %10 = vector.shape_cast %9 : vector<8x8x256xbf16> to vector<64x256xbf16>
    %c1_10 = arith.constant 1 : index
    %c0_11 = arith.constant 0 : index
    %c0_12 = arith.constant 0 : index
    %11 = vector.load %arg3[%c1_10, %c0_11, %c0_12] : memref<3x256x128xbf16, #tpu.memory_space<vmem>>, vector<1x256x128xbf16>
    %12 = vector.shape_cast %11 : vector<1x256x128xbf16> to vector<256x128xbf16>
    %cst_13 = arith.constant dense<0.000000e+00> : vector<64x128xf32>
    %13 = tpu.matmul %10, %12, %cst_13 {dimension_numbers = #tpu.dot_dimension_numbers<[1], [0], [0], [1], [0, 0, 1, 1], [], []>} : vector<64x256xbf16>, vector<256x128xbf16>, vector<64x128xf32> -> vector<64x128xf32>
    %14 = arith.addf %7, %13 : vector<64x128xf32>
    %c0_14 = arith.constant 0 : index
    %c2 = arith.constant 2 : index
    %c0_15 = arith.constant 0 : index
    %c0_16 = arith.constant 0 : index
    %15 = vector.load %arg1[%c0_14, %c2, %c0_15, %c0_16] : memref<1x10x8x256xbf16, #tpu.memory_space<vmem>>, vector<1x8x8x256xbf16>
    %16 = vector.shape_cast %15 : vector<1x8x8x256xbf16> to vector<8x8x256xbf16>
    %17 = vector.shape_cast %16 : vector<8x8x256xbf16> to vector<64x256xbf16>
    %c2_17 = arith.constant 2 : index
    %c0_18 = arith.constant 0 : index
    %c0_19 = arith.constant 0 : index
    %18 = vector.load %arg3[%c2_17, %c0_18, %c0_19] : memref<3x256x128xbf16, #tpu.memory_space<vmem>>, vector<1x256x128xbf16>
    %19 = vector.shape_cast %18 : vector<1x256x128xbf16> to vector<256x128xbf16>
    %cst_20 = arith.constant dense<0.000000e+00> : vector<64x128xf32>
    %20 = tpu.matmul %17, %19, %cst_20 {dimension_numbers = #tpu.dot_dimension_numbers<[1], [0], [0], [1], [0, 0, 1, 1], [], []>} : vector<64x256xbf16>, vector<256x128xbf16>, vector<64x128xf32> -> vector<64x128xf32>
    %21 = arith.addf %14, %20 : vector<64x128xf32>
    %c0_21 = arith.constant 0 : index
    %c0_22 = arith.constant 0 : index
    %22 = vector.load %arg4[%c0_21, %c0_22] : memref<1x128xf32, #tpu.memory_space<vmem>>, vector<1x128xf32>
    %23 = vector.broadcast %22 : vector<1x128xf32> to vector<64x128xf32>
    %24 = arith.mulf %21, %23 : vector<64x128xf32>
    %c0_23 = arith.constant 0 : index
    %c0_24 = arith.constant 0 : index
    %25 = vector.load %arg5[%c0_23, %c0_24] : memref<1x128xf32, #tpu.memory_space<vmem>>, vector<1x128xf32>
    %26 = vector.broadcast %25 : vector<1x128xf32> to vector<64x128xf32>
    %27 = arith.addf %24, %26 : vector<64x128xf32>
    %28 = tpu.iota {dimensions = array<i32: 1>} : vector<1x128xi32>
    %c0_25 = arith.constant 0 : index
    %c0_26 = arith.constant 0 : index
    %c0_27 = arith.constant 0 : index
    %c0_28 = arith.constant 0 : index
    %29 = vector.load %arg2[%c0_25, %c0_26, %c0_27, %c0_28] : memref<1x8x8x128xbf16, #tpu.memory_space<vmem>>, vector<1x8x8x128xbf16>
    %30 = vector.shape_cast %29 : vector<1x8x8x128xbf16> to vector<8x8x128xbf16>
    %31 = vector.shape_cast %30 : vector<8x8x128xbf16> to vector<64x128xbf16>
    %32 = arith.extf %31 : vector<64x128xbf16> to vector<64x128xf32>
    %c64_i32 = arith.constant 64 : i32
    %33 = vector.broadcast %c64_i32 : i32 to vector<1x128xi32>
    %34 = arith.cmpi slt, %28, %33 : vector<1x128xi32>
    %cst_29 = arith.constant 0.000000e+00 : f32
    %35 = vector.shape_cast %34 : vector<1x128xi1> to vector<1x128xi1>
    %36 = vector.broadcast %35 : vector<1x128xi1> to vector<64x128xi1>
    %37 = vector.broadcast %cst_29 : f32 to vector<64x128xf32>
    %38 = arith.select %36, %32, %37 : vector<64x128xi1>, vector<64x128xf32>
    %39 = arith.addf %27, %38 : vector<64x128xf32>
    %cst_30 = arith.constant 0.000000e+00 : f32
    %40 = vector.broadcast %cst_30 : f32 to vector<64x128xf32>
    %41 = arith.maximumf %39, %40 : vector<64x128xf32>
    %42 = vector.shape_cast %41 : vector<64x128xf32> to vector<8x8x128xf32>
    %c0_31 = arith.constant 0 : index
    %c0_32 = arith.constant 0 : index
    %c0_33 = arith.constant 0 : index
    %c0_34 = arith.constant 0 : index
    %43 = vector.load %arg6[%c0_31, %c0_32, %c0_33, %c0_34] : memref<1x8x8x128xf32, #tpu.memory_space<vmem>>, vector<1x8x8x128xf32>
    %44 = vector.shape_cast %43 : vector<1x8x8x128xf32> to vector<8x8x128xf32>
    %45 = vector.shape_cast %42 : vector<8x8x128xf32> to vector<1x8x8x128xf32>
    tpu.vector_store %arg6[%c0_31, %c0_32, %c0_33, %c0_34], %45 {strides = array<i32>} : memref<1x8x8x128xf32, #tpu.memory_space<vmem>>, vector<1x8x8x128xf32>,
    return
  }
  func.func @transform_0(%arg0: i32) -> (i32, i32, i32, i32) {
    %c0_i32 = arith.constant 0 : i32
    %c0_i32_0 = arith.constant 0 : i32
    %c0_i32_1 = arith.constant 0 : i32
    %c0_i32_2 = arith.constant 0 : i32
    return %arg0, %c0_i32, %c0_i32_0, %c0_i32_1 : i32, i32, i32, i32
  }
  func.func @transform_1(%arg0: i32) -> (i32, i32, i32, i32) {
    %c0_i32 = arith.constant 0 : i32
    %c0_i32_0 = arith.constant 0 : i32
    %c0_i32_1 = arith.constant 0 : i32
    %c0_i32_2 = arith.constant 0 : i32
    return %arg0, %c0_i32, %c0_i32_0, %c0_i32_1 : i32, i32, i32, i32
  }
  func.func @transform_2(%arg0: i32) -> (i32, i32, i32) {
    %c0_i32 = arith.constant 0 : i32
    %c0_i32_0 = arith.constant 0 : i32
    %c0_i32_1 = arith.constant 0 : i32
    %c0_i32_2 = arith.constant 0 : i32
    return %c0_i32, %c0_i32_0, %c0_i32_1 : i32, i32, i32
  }
  func.func @transform_3(%arg0: i32) -> (i32, i32) {
    %c0_i32 = arith.constant 0 : i32
    %c0_i32_0 = arith.constant 0 : i32
    %c0_i32_1 = arith.constant 0 : i32
    return %c0_i32, %c0_i32_0 : i32, i32
  }
  func.func @transform_4(%arg0: i32) -> (i32, i32) {
    %c0_i32 = arith.constant 0 : i32
    %c0_i32_0 = arith.constant 0 : i32
    %c0_i32_1 = arith.constant 0 : i32
    return %c0_i32, %c0_i32_0 : i32, i32
  }
  func.func @transform_5(%arg0: i32) -> (i32, i32, i32, i32) {
    %c0_i32 = arith.constant 0 : i32
    %c0_i32_0 = arith.constant 0 : i32
    %c0_i32_1 = arith.constant 0 : i32
    %c0_i32_2 = arith.constant 0 : i32
    return %arg0, %c0_i32, %c0_i32_0, %c0_i32_1 : i32, i32, i32, i32
  }
}

</mosaic_0001>

<llo_original>
// kernel: resnet_block_forward.2
$region0: #{resnet_block_forward.2}
  #allocation0 [shape = 'u32[]', space=smem, size = 0x4, offset = 0x4, fixed_abs, tag = 'smem constant byte address 0x4 - core index']
  #allocation1 [shape = 'u32[144,128]{1,0:T(1,128)}', space=vmem, size = 0x12000, scoped, tag = 'internal scratch']
  %s0 = inlined_call_operand.vmem [shape: bf16[2,2,9,8,128], index: 0, kind: input, shape index: {}]
  %s1 = inlined_call_operand.vmem [shape: bf16[3,128,128], index: 1, kind: input, shape index: {}]
  %s2 = inlined_call_operand.vmem [shape: f32[1,128], index: 2, kind: input, shape index: {}]
  %s3 = inlined_call_operand.vmem [shape: f32[1,128], index: 3, kind: input, shape index: {}]
  %s4 = inlined_call_operand.vmem [shape: bf16[2,8,8,128], index: 4, kind: output, shape index: {}]
  %s5 = sld [smem:[#allocation0]]
  $region49: #{resnet_block_forward.2} parent=0
    _
  %s7 = ssub.s32 1, %s5
  %s8 = scalar_select 0, %s7, %s5
  loop: start=0, step=1, limit=4
  $region2: #{resnet_block_forward.2} parent=0 // loop_pre_header
    _
  $region3: #{resnet_block_forward.2} parent=0 // loop_header
    %s10 = sphi 0, %s14
    %p11 = scmp.ge.s32.totalorder %s10, 4
    %s20 = sphi 0, %s22
    %s23 = sphi 0, %s20
    %s24 = sphi 0, %s23
    %s40 = sphi 0, %s24
    %s44 = sphi 0, %s44
    %s46 = sphi 0, %s44
    %s47 = sphi 0, %s46
    %s61 = sphi 0, %s47
    %s65 = sphi 0, %s65
    %s67 = sphi 0, %s65
    %s68 = sphi 0, %s67
    %s82 = sphi 0, %s68
    %s86 = sphi 0, %s86
    %s88 = sphi 0, %s86
    %s89 = sphi 0, %s88
    %s103 = sphi 0, %s89
    %s109 = sphi 0, %s111
    %s112 = sphi 0, %s109
    %s113 = sphi 0, %s112
    %s129 = sphi 0, %s113
  $region4: #{resnet_block_forward.2} parent=0 // loop_header_branch
    %13 = sbr.rel (%p11) target = $region8
  $region5: #{resnet_block_forward.2} parent=0 // loop_body
    %s15 = ssub.s32 %s10, 1
    %s16 = ssub.s32 %s10, 2
    %s17 = sadd.s32 %s10, 1
    %s18 = ssub.s32 %s10, %s17
    %p19 = scmp.eq.s32.totalorder %s18, 0
    %s21 = sadd.s32 %s20, 1
    %s22 = scalar_select %p19, %s20, %s21
    %p25 = pneg %p19
    %p26 = scmp.eq.s32.totalorder %s10, 1
    %p27 = por %p25, %p26
    %p28 = scmp.ne.s32.totalorder %s20, %s23
    %p29 = scmp.eq.s32.totalorder %s10, 0
    %p30 = por %p28, %p29
    %p31 = scmp.ne.s32.totalorder %s20, %s23
    %p32 = scmp.eq.s32.totalorder %s15, 1
    %p33 = por %p31, %p32
    %p34 = scmp.ne.s32.totalorder %s23, %s24
    %p35 = scmp.eq.s32.totalorder %s15, 0
    %p36 = por %p34, %p35
    %p37 = scmp.ne.s32.totalorder %s23, %s24
    %p38 = scmp.eq.s32.totalorder %s16, 1
    %p39 = por %p37, %p38
    %p41 = scmp.ne.s32.totalorder %s24, %s40
    %p42 = scmp.eq.s32.totalorder %s16, 0
    %p43 = por %p41, %p42
    %s45 = sadd.s32 %s44, 1
    %p48 = scmp.eq.s32.totalorder %s10, 1
    %p49 = scmp.ne.s32.totalorder %s44, %s46
    %p50 = scmp.eq.s32.totalorder %s10, 0
    %p51 = por %p49, %p50
    %p52 = scmp.ne.s32.totalorder %s44, %s46
    %p53 = scmp.eq.s32.totalorder %s15, 1
    %p54 = por %p52, %p53
    %p55 = scmp.ne.s32.totalorder %s46, %s47
    %p56 = scmp.eq.s32.totalorder %s15, 0
    %p57 = por %p55, %p56
    %p58 = scmp.ne.s32.totalorder %s46, %s47
    %p59 = scmp.eq.s32.totalorder %s16, 1
    %p60 = por %p58, %p59
    %p62 = scmp.ne.s32.totalorder %s47, %s61
    %p63 = scmp.eq.s32.totalorder %s16, 0
    %p64 = por %p62, %p63
    %s66 = sadd.s32 %s65, 1
    %p69 = scmp.eq.s32.totalorder %s10, 1
    %p70 = scmp.ne.s32.totalorder %s65, %s67
    %p71 = scmp.eq.s32.totalorder %s10, 0
    %p72 = por %p70, %p71
    %p73 = scmp.ne.s32.totalorder %s65, %s67
    %p74 = scmp.eq.s32.totalorder %s15, 1
    %p75 = por %p73, %p74
    %p76 = scmp.ne.s32.totalorder %s67, %s68
    %p77 = scmp.eq.s32.totalorder %s15, 0
    %p78 = por %p76, %p77
    %p79 = scmp.ne.s32.totalorder %s67, %s68
    %p80 = scmp.eq.s32.totalorder %s16, 1
    %p81 = por %p79, %p80
    %p83 = scmp.ne.s32.totalorder %s68, %s82
    %p84 = scmp.eq.s32.totalorder %s16, 0
    %p85 = por %p83, %p84
    %s87 = sadd.s32 %s86, 1
    %p90 = scmp.eq.s32.totalorder %s10, 1
    %p91 = scmp.ne.s32.totalorder %s86, %s88
    %p92 = scmp.eq.s32.totalorder %s10, 0
    %p93 = por %p91, %p92
    %p94 = scmp.ne.s32.totalorder %s86, %s88
    %p95 = scmp.eq.s32.totalorder %s15, 1
    %p96 = por %p94, %p95
    %p97 = scmp.ne.s32.totalorder %s88, %s89
    %p98 = scmp.eq.s32.totalorder %s15, 0
    %p99 = por %p97, %p98
    %p100 = scmp.ne.s32.totalorder %s88, %s89
    %p101 = scmp.eq.s32.totalorder %s16, 1
    %p102 = por %p100, %p101
    %p104 = scmp.ne.s32.totalorder %s89, %s103
    %p105 = scmp.eq.s32.totalorder %s16, 0
    %p106 = por %p104, %p105
    %s107 = ssub.s32 %s10, %s17
    %p108 = scmp.eq.s32.totalorder %s107, 0
    %s110 = sadd.s32 %s109, 1
    %s111 = scalar_select %p108, %s109, %s110
    %p114 = pneg %p108
    %p115 = scmp.eq.s32.totalorder %s10, 1
    %p116 = por %p114, %p115
    %p117 = scmp.ne.s32.totalorder %s109, %s112
    %p118 = scmp.eq.s32.totalorder %s10, 0
    %p119 = por %p117, %p118
    %p120 = scmp.ne.s32.totalorder %s109, %s112
    %p121 = scmp.eq.s32.totalorder %s15, 1
    %p122 = por %p120, %p121
    %p123 = scmp.ne.s32.totalorder %s112, %s113
    %p124 = scmp.eq.s32.totalorder %s15, 0
    %p125 = por %p123, %p124
    %p126 = scmp.ne.s32.totalorder %s112, %s113
    %p127 = scmp.eq.s32.totalorder %s16, 1
    %p128 = por %p126, %p127
    %p130 = scmp.ne.s32.totalorder %s113, %s129
    %p131 = scmp.eq.s32.totalorder %s16, 0
    %p132 = por %p130, %p131
    %p133 = scmp.le.s32.totalorder 1, %s10
    %p134 = scmp.lt.s32.totalorder %s10, 3
    %p135 = pnand %p133, %p134
    %p136 = pneg %p135
    // Predicated region
    $region9: #{resnet_block_forward.2} parent=5 // pred_check
      _
    $region10: #{resnet_block_forward.2} parent=5 // pred_check_branch
      %138 = sbr.rel (%p135) target = $region12
    $region11: #{resnet_block_forward.2} parent=5 // pred_region
      %s139 = ssub.s32 %s10, 1
      // Predicated region
      $region13: #{resnet_block_forward.2} parent=11 // pred_check
        %p140 = pneg %p57
      $region14: #{resnet_block_forward.2} parent=11 // pred_check_branch
        %142 = sbr.rel (%p140) target = $region16
      $region15: #{resnet_block_forward.2} parent=11 // pred_region
        _
      $region16: #{resnet_block_forward.2} parent=11 // pred_fallthru
        _
      // Predicated region
      $region17: #{resnet_block_forward.2} parent=11 // pred_check
        %p143 = pneg %p78
      $region18: #{resnet_block_forward.2} parent=11 // pred_check_branch
        %145 = sbr.rel (%p143) target = $region20
      $region19: #{resnet_block_forward.2} parent=11 // pred_region
        _
      $region20: #{resnet_block_forward.2} parent=11 // pred_fallthru
        _
      // Predicated region
      $region21: #{resnet_block_forward.2} parent=11 // pred_check
        %p146 = pneg %p99
      $region22: #{resnet_block_forward.2} parent=11 // pred_check_branch
        %148 = sbr.rel (%p146) target = $region24
      $region23: #{resnet_block_forward.2} parent=11 // pred_region
        _
      $region24: #{resnet_block_forward.2} parent=11 // pred_fallthru
        _
    $region12: #{resnet_block_forward.2} parent=5 // pred_fallthru
      _
    %p149 = scmp.lt.s32.totalorder %s10, 2
    // Predicated region
    $region25: #{resnet_block_forward.2} parent=5 // pred_check
      %p150 = pneg %p149
    $region26: #{resnet_block_forward.2} parent=5 // pred_check_branch
      %152 = sbr.rel (%p150) target = $region28
    $region27: #{resnet_block_forward.2} parent=5 // pred_region
      // Predicated region
      $region29: #{resnet_block_forward.2} parent=27 // pred_check
        %p153 = pneg %p30
      $region30: #{resnet_block_forward.2} parent=27 // pred_check_branch
        %155 = sbr.rel (%p153) target = $region32
      $region31: #{resnet_block_forward.2} parent=27 // pred_region
        %p156 = scmp.lt.s32.totalorder %s10, 1
        %s157 = scalar_select %p156, %s10, 1
        %s158 = smul.addr %s157, 18
        %s159 = smul.addr %s158, 4
        %s160 = scalar_lea.vmem %s0, %s159
      $region32: #{resnet_block_forward.2} parent=27 // pred_fallthru
        _
    $region28: #{resnet_block_forward.2} parent=5 // pred_fallthru
      _
    %p161 = scmp.le.s32.totalorder 1, %s10
    %p162 = scmp.lt.s32.totalorder %s10, 3
    %p163 = pnand %p161, %p162
    %p164 = pneg %p163
    // Predicated region
    $region33: #{resnet_block_forward.2} parent=5 // pred_check
      _
    $region34: #{resnet_block_forward.2} parent=5 // pred_check_branch
      %166 = sbr.rel (%p163) target = $region36
    $region35: #{resnet_block_forward.2} parent=5 // pred_region
      %s167 = ssub.s32 %s10, 1
      %p168 = scmp.lt.s32.totalorder %s15, 1
      %s169 = scalar_select %p168, %s15, 1
      %s170 = smul.addr %s169, 18
      %s171 = smul.addr %s170, 4
      %s172 = scalar_lea.vmem %s0, %s171
      %p173 = pneg %p36
      %p174 = pneg %p33
      %p175 = pneg %p57
      %p176 = pneg %p54
      %p177 = pneg %p78
      %p178 = pneg %p75
      %p179 = pneg %p99
      %p180 = pneg %p96
      %p181 = pneg %p125
      %p182 = pneg %p122
      %p183 = scmp.lt.s32.totalorder %s15, 1
      %s184 = scalar_select %p183, %s15, 1
      %s185 = smul.addr %s184, 8
      %s186 = smul.addr %s185, 4
      %s187 = scalar_lea.vmem %s4, %s186
      %p188 = scmp.lt.s32.totalorder %s15, 1
      %s189 = scalar_select %p188, %s15, 1
      %s190 = smul.addr %s189, 18
      %s191 = smul.addr %s190, 4
      %s192 = scalar_lea.vmem %s0, %s191
      %p193 = scmp.lt.s32.totalorder %s15, 1
      %s194 = scalar_select %p193, %s15, 1
      %s195 = smul.addr %s194, 8
      %s196 = smul.addr %s195, 4
      %s197 = scalar_lea.vmem %s4, %s196
      %v199 = vld [vmem:[%s192] sm:$0xf]
      %v200 = vld [vmem:[%s192 + $0x4] sm:$0xf]
      %v201 = vld [vmem:[%s192 + $0x8] sm:$0xf]
      %v202 = vld [vmem:[%s192 + $0xc] sm:$0xf]
      %v203 = vld [vmem:[%s192 + $0x10] sm:$0xf]
      %v204 = vld [vmem:[%s192 + $0x14] sm:$0xf]
      %v205 = vld [vmem:[%s192 + $0x18] sm:$0xf]
      %v206 = vld [vmem:[%s192 + $0x1c] sm:$0xf]
      %v207 = vld [vmem:[%s1] sm:$0xf]
      %v208 = vld [vmem:[%s1 + $0x4] sm:$0xf]
      %v209 = vld [vmem:[%s1 + $0x8] sm:$0xf]
      %v210 = vld [vmem:[%s1 + $0xc] sm:$0xf]
      %v211 = vld [vmem:[%s1 + $0x10] sm:$0xf]
      %v212 = vld [vmem:[%s1 + $0x14] sm:$0xf]
      %v213 = vld [vmem:[%s1 + $0x18] sm:$0xf]
      %v214 = vld [vmem:[%s1 + $0x1c] sm:$0xf]
      %v215 = vld [vmem:[%s1 + $0x20] sm:$0xf]
      %v216 = vld [vmem:[%s1 + $0x24] sm:$0xf]
      %v217 = vld [vmem:[%s1 + $0x28] sm:$0xf]
      %v218 = vld [vmem:[%s1 + $0x2c] sm:$0xf]
      %v219 = vld [vmem:[%s1 + $0x30] sm:$0xf]
      %v220 = vld [vmem:[%s1 + $0x34] sm:$0xf]
      %v221 = vld [vmem:[%s1 + $0x38] sm:$0xf]
      %v222 = vld [vmem:[%s1 + $0x3c] sm:$0xf]
      %s223 = scalar_lea.vmem %s192, 36
      %v224 = vld [vmem:[%s223] sm:$0xf]
      %v225 = vld [vmem:[%s223 + $0x4] sm:$0xf]
      %v226 = vld [vmem:[%s223 + $0x8] sm:$0xf]
      %v227 = vld [vmem:[%s223 + $0xc] sm:$0xf]
      %v228 = vld [vmem:[%s223 + $0x10] sm:$0xf]
      %v229 = vld [vmem:[%s223 + $0x14] sm:$0xf]
      %v230 = vld [vmem:[%s223 + $0x18] sm:$0xf]
      %v231 = vld [vmem:[%s223 + $0x1c] sm:$0xf]
      %s232 = scalar_lea.vmem %s1, 64
      %v233 = vld [vmem:[%s232] sm:$0xf]
      %v234 = vld [vmem:[%s232 + $0x4] sm:$0xf]
      %v235 = vld [vmem:[%s232 + $0x8] sm:$0xf]
      %v236 = vld [vmem:[%s232 + $0xc] sm:$0xf]
      %v237 = vld [vmem:[%s232 + $0x10] sm:$0xf]
      %v238 = vld [vmem:[%s232 + $0x14] sm:$0xf]
      %v239 = vld [vmem:[%s232 + $0x18] sm:$0xf]
      %v240 = vld [vmem:[%s232 + $0x1c] sm:$0xf]
      %v241 = vld [vmem:[%s232 + $0x20] sm:$0xf]
      %v242 = vld [vmem:[%s232 + $0x24] sm:$0xf]
      %v243 = vld [vmem:[%s232 + $0x28] sm:$0xf]
      %v244 = vld [vmem:[%s232 + $0x2c] sm:$0xf]
      %v245 = vld [vmem:[%s232 + $0x30] sm:$0xf]
      %v246 = vld [vmem:[%s232 + $0x34] sm:$0xf]
      %v247 = vld [vmem:[%s232 + $0x38] sm:$0xf]
      %v248 = vld [vmem:[%s232 + $0x3c] sm:$0xf]
      %v257 = vunpack.c.l.b16 %v224
      %v258 = vunpack.c.l.b16 %v225
      %v259 = vunpack.c.l.b16 %v226
      %v260 = vunpack.c.l.b16 %v227
      %v261 = vunpack.c.l.b16 %v228
      %v262 = vunpack.c.l.b16 %v229
      %v263 = vunpack.c.l.b16 %v230
      %v264 = vunpack.c.l.b16 %v231
      %v265 = vpack.c.b16 %v258, %v257
      %v266 = vpack.c.b16 %v260, %v259
      %v267 = vpack.c.b16 %v262, %v261
      %v268 = vpack.c.b16 %v264, %v263
      %v289 = vunpack.c.l.b16 %v233
      %v290 = vunpack.c.l.b16 %v234
      %v291 = vunpack.c.l.b16 %v235
      %v292 = vunpack.c.l.b16 %v236
      %v293 = vunpack.c.l.b16 %v237
      %v294 = vunpack.c.l.b16 %v238
      %v295 = vunpack.c.l.b16 %v239
      %v296 = vunpack.c.l.b16 %v240
      %v297 = vunpack.c.l.b16 %v241
      %v298 = vunpack.c.l.b16 %v242
      %v299 = vunpack.c.l.b16 %v243
      %v300 = vunpack.c.l.b16 %v244
      %v301 = vunpack.c.l.b16 %v245
      %v302 = vunpack.c.l.b16 %v246
      %v303 = vunpack.c.l.b16 %v247
      %v304 = vunpack.c.l.b16 %v248
      %v305 = vpack.c.b16 %v290, %v289
      %v306 = vpack.c.b16 %v292, %v291
      %v307 = vpack.c.b16 %v294, %v293
      %v308 = vpack.c.b16 %v296, %v295
      %v309 = vpack.c.b16 %v298, %v297
      %v310 = vpack.c.b16 %v300, %v299
      %v311 = vpack.c.b16 %v302, %v301
      %v312 = vpack.c.b16 %v304, %v303
      %321 = vmatprep.subr.bf16.mxu0 0
      %322 = vmatpush1.bf16.msra.mxu0 %v305
      %323 = vmatprep.subr.bf16.mxu0 0
      %324 = vmatpush1.bf16.msra.mxu0 %v306
      %325 = vmatprep.subr.bf16.mxu0 0
      %326 = vmatpush1.bf16.msra.mxu0 %v307
      %327 = vmatprep.subr.bf16.mxu0 0
      %328 = vmatpush1.bf16.msra.mxu0 %v308
      %329 = vmatprep.subr.bf16.mxu0 0
      %330 = vmatpush1.bf16.msra.mxu0 %v309
      %331 = vmatprep.subr.bf16.mxu0 0
      %332 = vmatpush1.bf16.msra.mxu0 %v310
      %333 = vmatprep.subr.bf16.mxu0 0
      %334 = vmatpush1.bf16.msra.mxu0 %v311
      %335 = vmatprep.subr.bf16.mxu0 0
      %336 = vmatpush1.bf16.msra.mxu0 %v312
      %337 = vmatprep.subr.bf16.mxu0 0
      %338 = vmatpush1.bf16.msra.mxu0 0
      %339 = vmatprep.subr.bf16.mxu0 0
      %340 = vmatpush1.bf16.msra.mxu0 0
      %341 = vmatprep.subr.bf16.mxu0 0
      %342 = vmatpush1.bf16.msra.mxu0 0
      %343 = vmatprep.subr.bf16.mxu0 0
      %344 = vmatpush1.bf16.msra.mxu0 0
      %345 = vmatprep.subr.bf16.mxu0 0
      %346 = vmatpush1.bf16.msra.mxu0 0
      %347 = vmatprep.subr.bf16.mxu0 0
      %348 = vmatpush1.bf16.msra.mxu0 0
      %349 = vmatprep.subr.bf16.mxu0 0
      %350 = vmatpush1.bf16.msra.mxu0 0
      %351 = vmatprep.subr.bf16.mxu0 0
      %352 = vmatpush1.bf16.msra.mxu0 0
      %353 = vmatprep.mubr.bf16.mxu0 0
      %354 = vmatmul.mubr.bf16.gmra.mrb[0].mxu0 %v265
      %v355 = vpop.f32.mrb[0].mxu0
      %v356 = vadd.f32 0.0, %v355
      %v357 = vpop.f32.mrb[0].mxu0
      %v358 = vpop.f32.mrb[0].mxu0
      %v359 = vadd.f32 0.0, %v358
      %v360 = vpop.f32.mrb[0].mxu0
      %361 = vmatprep.mubr.bf16.mxu0 0
      %362 = vmatmul.mubr.bf16.gmra.mrb[0].mxu0 %v266
      %v363 = vpop.f32.mrb[0].mxu0
      %v364 = vadd.f32 0.0, %v363
      %v365 = vpop.f32.mrb[0].mxu0
      %v366 = vpop.f32.mrb[0].mxu0
      %v367 = vadd.f32 0.0, %v366
      %v368 = vpop.f32.mrb[0].mxu0
      %369 = vmatprep.mubr.bf16.mxu0 0
      %370 = vmatmul.mubr.bf16.gmra.mrb[0].mxu0 %v267
      %v371 = vpop.f32.mrb[0].mxu0
      %v372 = vadd.f32 0.0, %v371
      %v373 = vpop.f32.mrb[0].mxu0
      %v374 = vpop.f32.mrb[0].mxu0
      %v375 = vadd.f32 0.0, %v374
      %v376 = vpop.f32.mrb[0].mxu0
      %377 = vmatprep.mubr.bf16.mxu0 0
      %378 = vmatmul.mubr.bf16.gmra.mrb[0].mxu0 %v268
      %v379 = vpop.f32.mrb[0].mxu0
      %v380 = vadd.f32 0.0, %v379
      %v381 = vpop.f32.mrb[0].mxu0
      %v382 = vpop.f32.mrb[0].mxu0
      %v383 = vadd.f32 0.0, %v382
      %v384 = vpop.f32.mrb[0].mxu0
      %385 = vdwg.mxu0
      %v394 = vunpack.c.l.b16 %v199
      %v395 = vunpack.c.l.b16 %v200
      %v396 = vunpack.c.l.b16 %v201
      %v397 = vunpack.c.l.b16 %v202
      %v398 = vunpack.c.l.b16 %v203
      %v399 = vunpack.c.l.b16 %v204
      %v400 = vunpack.c.l.b16 %v205
      %v401 = vunpack.c.l.b16 %v206
      %v402 = vpack.c.b16 %v395, %v394
      %v403 = vpack.c.b16 %v397, %v396
      %v404 = vpack.c.b16 %v399, %v398
      %v405 = vpack.c.b16 %v401, %v400
      %v426 = vunpack.c.l.b16 %v207
      %v427 = vunpack.c.l.b16 %v208
      %v428 = vunpack.c.l.b16 %v209
      %v429 = vunpack.c.l.b16 %v210
      %v430 = vunpack.c.l.b16 %v211
      %v431 = vunpack.c.l.b16 %v212
      %v432 = vunpack.c.l.b16 %v213
      %v433 = vunpack.c.l.b16 %v214
      %v434 = vunpack.c.l.b16 %v215
      %v435 = vunpack.c.l.b16 %v216
      %v436 = vunpack.c.l.b16 %v217
      %v437 = vunpack.c.l.b16 %v218
      %v438 = vunpack.c.l.b16 %v219
      %v439 = vunpack.c.l.b16 %v220
      %v440 = vunpack.c.l.b16 %v221
      %v441 = vunpack.c.l.b16 %v222
      %v442 = vpack.c.b16 %v427, %v426
      %v443 = vpack.c.b16 %v429, %v428
      %v444 = vpack.c.b16 %v431, %v430
      %v445 = vpack.c.b16 %v433, %v432
      %v446 = vpack.c.b16 %v435, %v434
      %v447 = vpack.c.b16 %v437, %v436
      %v448 = vpack.c.b16 %v439, %v438
      %v449 = vpack.c.b16 %v441, %v440
      %458 = vmatprep.subr.bf16.mxu0 0
      %459 = vmatpush1.bf16.msra.mxu0 %v442
      %460 = vmatprep.subr.bf16.mxu0 0
      %461 = vmatpush1.bf16.msra.mxu0 %v443
      %462 = vmatprep.subr.bf16.mxu0 0
      %463 = vmatpush1.bf16.msra.mxu0 %v444
      %464 = vmatprep.subr.bf16.mxu0 0
      %465 = vmatpush1.bf16.msra.mxu0 %v445
      %466 = vmatprep.subr.bf16.mxu0 0
      %467 = vmatpush1.bf16.msra.mxu0 %v446
      %468 = vmatprep.subr.bf16.mxu0 0
      %469 = vmatpush1.bf16.msra.mxu0 %v447
      %470 = vmatprep.subr.bf16.mxu0 0
      %471 = vmatpush1.bf16.msra.mxu0 %v448
      %472 = vmatprep.subr.bf16.mxu0 0
      %473 = vmatpush1.bf16.msra.mxu0 %v449
      %474 = vmatprep.subr.bf16.mxu0 0
      %475 = vmatpush1.bf16.msra.mxu0 0
      %476 = vmatprep.subr.bf16.mxu0 0
      %477 = vmatpush1.bf16.msra.mxu0 0
      %478 = vmatprep.subr.bf16.mxu0 0
      %479 = vmatpush1.bf16.msra.mxu0 0
      %480 = vmatprep.subr.bf16.mxu0 0
      %481 = vmatpush1.bf16.msra.mxu0 0
      %482 = vmatprep.subr.bf16.mxu0 0
      %483 = vmatpush1.bf16.msra.mxu0 0
      %484 = vmatprep.subr.bf16.mxu0 0
      %485 = vmatpush1.bf16.msra.mxu0 0
      %486 = vmatprep.subr.bf16.mxu0 0
      %487 = vmatpush1.bf16.msra.mxu0 0
      %488 = vmatprep.subr.bf16.mxu0 0
      %489 = vmatpush1.bf16.msra.mxu0 0
      %490 = vmatprep.mubr.bf16.mxu0 0
      %491 = vmatmul.mubr.bf16.gmra.mrb[0].mxu0 %v402
      %v492 = vpop.f32.mrb[0].mxu0
      %v493 = vadd.f32 %v356, %v492
      %v494 = vpop.f32.mrb[0].mxu0
      %v495 = vpop.f32.mrb[0].mxu0
      %v496 = vadd.f32 %v359, %v495
      %v497 = vpop.f32.mrb[0].mxu0
      %498 = vmatprep.mubr.bf16.mxu0 0
      %499 = vmatmul.mubr.bf16.gmra.mrb[0].mxu0 %v403
      %v500 = vpop.f32.mrb[0].mxu0
      %v501 = vadd.f32 %v364, %v500
      %v502 = vpop.f32.mrb[0].mxu0
      %v503 = vpop.f32.mrb[0].mxu0
      %v504 = vadd.f32 %v367, %v503
      %v505 = vpop.f32.mrb[0].mxu0
      %506 = vmatprep.mubr.bf16.mxu0 0
      %507 = vmatmul.mubr.bf16.gmra.mrb[0].mxu0 %v404
      %v508 = vpop.f32.mrb[0].mxu0
      %v509 = vadd.f32 %v372, %v508
      %v510 = vpop.f32.mrb[0].mxu0
      %v511 = vpop.f32.mrb[0].mxu0
      %v512 = vadd.f32 %v375, %v511
      %v513 = vpop.f32.mrb[0].mxu0
      %514 = vmatprep.mubr.bf16.mxu0 0
      %515 = vmatmul.mubr.bf16.gmra.mrb[0].mxu0 %v405
      %v516 = vpop.f32.mrb[0].mxu0
      %v517 = vadd.f32 %v380, %v516
      %v518 = vpop.f32.mrb[0].mxu0
      %v519 = vpop.f32.mrb[0].mxu0
      %v520 = vadd.f32 %v383, %v519
      %v521 = vpop.f32.mrb[0].mxu0
      %522 = vdwg.mxu0
      %s523 = scalar_lea.vmem %s192, 4
      %v524 = vld [vmem:[%s523] sm:$0xf]
      %v525 = vld [vmem:[%s523 + $0x4] sm:$0xf]
      %v526 = vld [vmem:[%s523 + $0x8] sm:$0xf]
      %v527 = vld [vmem:[%s523 + $0xc] sm:$0xf]
      %v528 = vld [vmem:[%s523 + $0x10] sm:$0xf]
      %v529 = vld [vmem:[%s523 + $0x14] sm:$0xf]
      %v530 = vld [vmem:[%s523 + $0x18] sm:$0xf]
      %v531 = vld [vmem:[%s523 + $0x1c] sm:$0xf]
      %s532 = scalar_lea.vmem %s1, 128
      %v533 = vld [vmem:[%s532] sm:$0xf]
      %v534 = vld [vmem:[%s532 + $0x4] sm:$0xf]
      %v535 = vld [vmem:[%s532 + $0x8] sm:$0xf]
      %v536 = vld [vmem:[%s532 + $0xc] sm:$0xf]
      %v537 = vld [vmem:[%s532 + $0x10] sm:$0xf]
      %v538 = vld [vmem:[%s532 + $0x14] sm:$0xf]
      %v539 = vld [vmem:[%s532 + $0x18] sm:$0xf]
      %v540 = vld [vmem:[%s532 + $0x1c] sm:$0xf]
      %v541 = vld [vmem:[%s532 + $0x20] sm:$0xf]
      %v542 = vld [vmem:[%s532 + $0x24] sm:$0xf]
      %v543 = vld [vmem:[%s532 + $0x28] sm:$0xf]
      %v544 = vld [vmem:[%s532 + $0x2c] sm:$0xf]
      %v545 = vld [vmem:[%s532 + $0x30] sm:$0xf]
      %v546 = vld [vmem:[%s532 + $0x34] sm:$0xf]
      %v547 = vld [vmem:[%s532 + $0x38] sm:$0xf]
      %v548 = vld [vmem:[%s532 + $0x3c] sm:$0xf]
      %v557 = vunpack.c.l.b16 %v524
      %v558 = vunpack.c.l.b16 %v525
      %v559 = vunpack.c.l.b16 %v526
      %v560 = vunpack.c.l.b16 %v527
      %v561 = vunpack.c.l.b16 %v528
      %v562 = vunpack.c.l.b16 %v529
      %v563 = vunpack.c.l.b16 %v530
      %v564 = vunpack.c.l.b16 %v531
      %v565 = vpack.c.b16 %v558, %v557
      %v566 = vpack.c.b16 %v560, %v559
      %v567 = vpack.c.b16 %v562, %v561
      %v568 = vpack.c.b16 %v564, %v563
      %v589 = vunpack.c.l.b16 %v533
      %v590 = vunpack.c.l.b16 %v534
      %v591 = vunpack.c.l.b16 %v535
      %v592 = vunpack.c.l.b16 %v536
      %v593 = vunpack.c.l.b16 %v537
      %v594 = vunpack.c.l.b16 %v538
      %v595 = vunpack.c.l.b16 %v539
      %v596 = vunpack.c.l.b16 %v540
      %v597 = vunpack.c.l.b16 %v541
      %v598 = vunpack.c.l.b16 %v542
      %v599 = vunpack.c.l.b16 %v543
      %v600 = vunpack.c.l.b16 %v544
      %v601 = vunpack.c.l.b16 %v545
      %v602 = vunpack.c.l.b16 %v546
      %v603 = vunpack.c.l.b16 %v547
      %v604 = vunpack.c.l.b16 %v548
      %v605 = vpack.c.b16 %v590, %v589
      %v606 = vpack.c.b16 %v592, %v591
      %v607 = vpack.c.b16 %v594, %v593
      %v608 = vpack.c.b16 %v596, %v595
      %v609 = vpack.c.b16 %v598, %v597
      %v610 = vpack.c.b16 %v600, %v599
      %v611 = vpack.c.b16 %v602, %v601
      %v612 = vpack.c.b16 %v604, %v603
      %621 = vmatprep.subr.bf16.mxu0 0
      %622 = vmatpush1.bf16.msra.mxu0 %v605
      %623 = vmatprep.subr.bf16.mxu0 0
      %624 = vmatpush1.bf16.msra.mxu0 %v606
      %625 = vmatprep.subr.bf16.mxu0 0
      %626 = vmatpush1.bf16.msra.mxu0 %v607
      %627 = vmatprep.subr.bf16.mxu0 0
      %628 = vmatpush1.bf16.msra.mxu0 %v608
      %629 = vmatprep.subr.bf16.mxu0 0
      %630 = vmatpush1.bf16.msra.mxu0 %v609
      %631 = vmatprep.subr.bf16.mxu0 0
      %632 = vmatpush1.bf16.msra.mxu0 %v610
      %633 = vmatprep.subr.bf16.mxu0 0
      %634 = vmatpush1.bf16.msra.mxu0 %v611
      %635 = vmatprep.subr.bf16.mxu0 0
      %636 = vmatpush1.bf16.msra.mxu0 %v612
      %637 = vmatprep.subr.bf16.mxu0 0
      %638 = vmatpush1.bf16.msra.mxu0 0
      %639 = vmatprep.subr.bf16.mxu0 0
      %640 = vmatpush1.bf16.msra.mxu0 0
      %641 = vmatprep.subr.bf16.mxu0 0
      %642 = vmatpush1.bf16.msra.mxu0 0
      %643 = vmatprep.subr.bf16.mxu0 0
      %644 = vmatpush1.bf16.msra.mxu0 0
      %645 = vmatprep.subr.bf16.mxu0 0
      %646 = vmatpush1.bf16.msra.mxu0 0
      %647 = vmatprep.subr.bf16.mxu0 0
      %648 = vmatpush1.bf16.msra.mxu0 0
      %649 = vmatprep.subr.bf16.mxu0 0
      %650 = vmatpush1.bf16.msra.mxu0 0
      %651 = vmatprep.subr.bf16.mxu0 0
      %652 = vmatpush1.bf16.msra.mxu0 0
      %653 = vmatprep.mubr.bf16.mxu0 0
      %654 = vmatmul.mubr.bf16.gmra.mrb[0].mxu0 %v565
      %v655 = vpop.f32.mrb[0].mxu0
      %v656 = vadd.f32 0.0, %v655
      %v657 = vpop.f32.mrb[0].mxu0
      %v658 = vpop.f32.mrb[0].mxu0
      %v659 = vadd.f32 0.0, %v658
      %v660 = vpop.f32.mrb[0].mxu0
      %661 = vmatprep.mubr.bf16.mxu0 0
      %662 = vmatmul.mubr.bf16.gmra.mrb[0].mxu0 %v566
      %v663 = vpop.f32.mrb[0].mxu0
      %v664 = vadd.f32 0.0, %v663
      %v665 = vpop.f32.mrb[0].mxu0
      %v666 = vpop.f32.mrb[0].mxu0
      %v667 = vadd.f32 0.0, %v666
      %v668 = vpop.f32.mrb[0].mxu0
      %669 = vmatprep.mubr.bf16.mxu0 0
      %670 = vmatmul.mubr.bf16.gmra.mrb[0].mxu0 %v567
      %v671 = vpop.f32.mrb[0].mxu0
      %v672 = vadd.f32 0.0, %v671
      %v673 = vpop.f32.mrb[0].mxu0
      %v674 = vpop.f32.mrb[0].mxu0
      %v675 = vadd.f32 0.0, %v674
      %v676 = vpop.f32.mrb[0].mxu0
      %677 = vmatprep.mubr.bf16.mxu0 0
      %678 = vmatmul.mubr.bf16.gmra.mrb[0].mxu0 %v568
      %v679 = vpop.f32.mrb[0].mxu0
      %v680 = vadd.f32 0.0, %v679
      %v681 = vpop.f32.mrb[0].mxu0
      %v682 = vpop.f32.mrb[0].mxu0
      %v683 = vadd.f32 0.0, %v682
      %v684 = vpop.f32.mrb[0].mxu0
      %685 = vdwg.mxu0
      %v686 = vadd.f32 %v493, %v656
      %v687 = vadd.f32 %v496, %v659
      %v688 = vadd.f32 %v501, %v664
      %v689 = vadd.f32 %v504, %v667
      %v690 = vadd.f32 %v509, %v672
      %v691 = vadd.f32 %v512, %v675
      %v692 = vadd.f32 %v517, %v680
      %v693 = vadd.f32 %v520, %v683
      %v694 = vld [vmem:[%s2] sm:$0x1]
      %v696 = vlaneseq
      %v697 = vshrl.u32 %v696, 7
      %v698 = vsub.s32 0, %v697
      %v699 = vrot.slane %v694, %v698
      %v701 = vmul.f32 %v686, %v699
      %v702 = vmul.f32 %v687, %v699
      %v703 = vmul.f32 %v688, %v699
      %v704 = vmul.f32 %v689, %v699
      %v705 = vmul.f32 %v690, %v699
      %v706 = vmul.f32 %v691, %v699
      %v707 = vmul.f32 %v692, %v699
      %v708 = vmul.f32 %v693, %v699
      %v709 = vld [vmem:[%s3] sm:$0x1]
      %v711 = vlaneseq
      %v712 = vshrl.u32 %v711, 7
      %v713 = vsub.s32 0, %v712
      %v714 = vrot.slane %v709, %v713
      %v716 = vadd.f32 %v701, %v714
      %v717 = vadd.f32 %v702, %v714
      %v718 = vadd.f32 %v703, %v714
      %v719 = vadd.f32 %v704, %v714
      %v720 = vadd.f32 %v705, %v714
      %v721 = vadd.f32 %v706, %v714
      %v722 = vadd.f32 %v707, %v714
      %v723 = vadd.f32 %v708, %v714
      %v724 = vlaneseq
      %v725 = vand.u32 %v724, 127
      %vm726 = vcmp.ge.s32.totalorder %v725, 64
      %v727 = vmax.f32 %v716, 0.0
      %v728 = vmax.f32 %v717, 0.0
      %v729 = vmax.f32 %v718, 0.0
      %v730 = vmax.f32 %v719, 0.0
      %v731 = vmax.f32 %v720, 0.0
      %v732 = vmax.f32 %v721, 0.0
      %v733 = vmax.f32 %v722, 0.0
      %v734 = vmax.f32 %v723, 0.0
      %v735 = vsel %vm726, 1, 0
      %vm736 = vcmp.eq.s32.totalorder %v735, 1
      %v737 = vsel %vm736, %v727, %v716
      %v738 = vsel %vm736, %v728, %v717
      %v739 = vsel %vm736, %v729, %v718
      %v740 = vsel %vm736, %v730, %v719
      %v741 = vsel %vm736, %v731, %v720
      %v742 = vsel %vm736, %v732, %v721
      %v743 = vsel %vm736, %v733, %v722
      %v744 = vsel %vm736, %v734, %v723
      %v745 = vpack.c.bf16 %v737, %v737
      %v746 = vpack.c.bf16 %v738, %v738
      %v747 = vpack.c.bf16 %v739, %v739
      %v748 = vpack.c.bf16 %v740, %v740
      %v749 = vpack.c.bf16 %v741, %v741
      %v750 = vpack.c.bf16 %v742, %v742
      %v751 = vpack.c.bf16 %v743, %v743
      %v752 = vpack.c.bf16 %v744, %v744
      %753 = vst [vmem:[%s197] sm:$0xf] %v745
      %754 = vst [vmem:[%s197 + $0x4] sm:$0xf] %v746
      %755 = vst [vmem:[%s197 + $0x8] sm:$0xf] %v747
      %756 = vst [vmem:[%s197 + $0xc] sm:$0xf] %v748
      %757 = vst [vmem:[%s197 + $0x10] sm:$0xf] %v749
      %758 = vst [vmem:[%s197 + $0x14] sm:$0xf] %v750
      %759 = vst [vmem:[%s197 + $0x18] sm:$0xf] %v751
      %760 = vst [vmem:[%s197 + $0x1c] sm:$0xf] %v752
      %p761 = scmp.lt.s32.totalorder %s15, 1
      %s762 = scalar_select %p761, %s15, 1
      %s763 = smul.addr %s762, 8
      %s764 = smul.addr %s763, 4
      %s765 = scalar_lea.vmem %s4, %s764
      // Predicated region
      $region37: #{resnet_block_forward.2} parent=35 // pred_check
        %p766 = pneg %p122
      $region38: #{resnet_block_forward.2} parent=35 // pred_check_branch
        %768 = sbr.rel (%p766) target = $region40
      $region39: #{resnet_block_forward.2} parent=35 // pred_region
        _
      $region40: #{resnet_block_forward.2} parent=35 // pred_fallthru
        _
    $region36: #{resnet_block_forward.2} parent=5 // pred_fallthru
      _
    %p769 = scmp.le.s32.totalorder 2, %s10
    // Predicated region
    $region41: #{resnet_block_forward.2} parent=5 // pred_check
      %p770 = pneg %p769
    $region42: #{resnet_block_forward.2} parent=5 // pred_check_branch
      %772 = sbr.rel (%p770) target = $region44
    $region43: #{resnet_block_forward.2} parent=5 // pred_region
      %s773 = ssub.s32 %s10, 2
      // Predicated region
      $region45: #{resnet_block_forward.2} parent=43 // pred_check
        %p774 = pneg %p128
      $region46: #{resnet_block_forward.2} parent=43 // pred_check_branch
        %776 = sbr.rel (%p774) target = $region48
      $region47: #{resnet_block_forward.2} parent=43 // pred_region
        %p777 = scmp.lt.s32.totalorder %s16, 1
        %s778 = scalar_select %p777, %s16, 1
        %s779 = smul.addr %s778, 8
        %s780 = smul.addr %s779, 4
        %s781 = scalar_lea.vmem %s4, %s780
      $region48: #{resnet_block_forward.2} parent=43 // pred_fallthru
        _
    $region44: #{resnet_block_forward.2} parent=5 // pred_fallthru
      _
  $region6: #{resnet_block_forward.2} parent=0 // loop_footer
    %s14 = sadd.s32 1, %s10
  $region7: #{resnet_block_forward.2} parent=0 // loop_footer_branch
    %9 = sbr.rel target = $region3
  $region8: #{resnet_block_forward.2} parent=0 // loop_exit
    _

// kernel: resnet_block_forward.3
$region0: #{resnet_block_forward.3}
  #allocation0 [shape = 'u32[]', space=smem, size = 0x4, offset = 0x4, fixed_abs, tag = 'smem constant byte address 0x4 - core index']
  #allocation1 [shape = 'u32[144,128]{1,0:T(1,128)}', space=vmem, size = 0x12000, scoped, tag = 'internal scratch']
  %s0 = inlined_call_operand.vmem [shape: bf16[2,10,8,256], index: 0, kind: input, shape index: {}]
  %s1 = inlined_call_operand.vmem [shape: bf16[2,8,8,128], index: 1, kind: input, shape index: {}]
  %s2 = inlined_call_operand.vmem [shape: bf16[3,256,128], index: 2, kind: input, shape index: {}]
  %s3 = inlined_call_operand.vmem [shape: f32[1,128], index: 3, kind: input, shape index: {}]
  %s4 = inlined_call_operand.vmem [shape: f32[1,128], index: 4, kind: input, shape index: {}]
  %s5 = inlined_call_operand.vmem [shape: f32[2,8,8,128], index: 5, kind: output, shape index: {}]
  %s6 = sld [smem:[#allocation0]]
  $region53: #{resnet_block_forward.3} parent=0
    _
  %s8 = ssub.s32 1, %s6
  %s9 = scalar_select 0, %s8, %s6
  loop: start=0, step=1, limit=4
  $region2: #{resnet_block_forward.3} parent=0 // loop_pre_header
    _
  $region3: #{resnet_block_forward.3} parent=0 // loop_header
    %s11 = sphi 0, %s15
    %p12 = scmp.ge.s32.totalorder %s11, 4
    %s21 = sphi 0, %s23
    %s24 = sphi 0, %s21
    %s25 = sphi 0, %s24
    %s41 = sphi 0, %s25
    %s47 = sphi 0, %s49
    %s50 = sphi 0, %s47
    %s51 = sphi 0, %s50
    %s67 = sphi 0, %s51
    %s71 = sphi 0, %s71
    %s73 = sphi 0, %s71
    %s74 = sphi 0, %s73
    %s88 = sphi 0, %s74
    %s92 = sphi 0, %s92
    %s94 = sphi 0, %s92
    %s95 = sphi 0, %s94
    %s109 = sphi 0, %s95
    %s113 = sphi 0, %s113
    %s115 = sphi 0, %s113
    %s116 = sphi 0, %s115
    %s130 = sphi 0, %s116
    %s136 = sphi 0, %s138
    %s139 = sphi 0, %s136
    %s140 = sphi 0, %s139
    %s156 = sphi 0, %s140
  $region4: #{resnet_block_forward.3} parent=0 // loop_header_branch
    %14 = sbr.rel (%p12) target = $region8
  $region5: #{resnet_block_forward.3} parent=0 // loop_body
    %s16 = ssub.s32 %s11, 1
    %s17 = ssub.s32 %s11, 2
    %s18 = sadd.s32 %s11, 1
    %s19 = ssub.s32 %s11, %s18
    %p20 = scmp.eq.s32.totalorder %s19, 0
    %s22 = sadd.s32 %s21, 1
    %s23 = scalar_select %p20, %s21, %s22
    %p26 = pneg %p20
    %p27 = scmp.eq.s32.totalorder %s11, 1
    %p28 = por %p26, %p27
    %p29 = scmp.ne.s32.totalorder %s21, %s24
    %p30 = scmp.eq.s32.totalorder %s11, 0
    %p31 = por %p29, %p30
    %p32 = scmp.ne.s32.totalorder %s21, %s24
    %p33 = scmp.eq.s32.totalorder %s16, 1
    %p34 = por %p32, %p33
    %p35 = scmp.ne.s32.totalorder %s24, %s25
    %p36 = scmp.eq.s32.totalorder %s16, 0
    %p37 = por %p35, %p36
    %p38 = scmp.ne.s32.totalorder %s24, %s25
    %p39 = scmp.eq.s32.totalorder %s17, 1
    %p40 = por %p38, %p39
    %p42 = scmp.ne.s32.totalorder %s25, %s41
    %p43 = scmp.eq.s32.totalorder %s17, 0
    %p44 = por %p42, %p43
    %s45 = ssub.s32 %s11, %s18
    %p46 = scmp.eq.s32.totalorder %s45, 0
    %s48 = sadd.s32 %s47, 1
    %s49 = scalar_select %p46, %s47, %s48
    %p52 = pneg %p46
    %p53 = scmp.eq.s32.totalorder %s11, 1
    %p54 = por %p52, %p53
    %p55 = scmp.ne.s32.totalorder %s47, %s50
    %p56 = scmp.eq.s32.totalorder %s11, 0
    %p57 = por %p55, %p56
    %p58 = scmp.ne.s32.totalorder %s47, %s50
    %p59 = scmp.eq.s32.totalorder %s16, 1
    %p60 = por %p58, %p59
    %p61 = scmp.ne.s32.totalorder %s50, %s51
    %p62 = scmp.eq.s32.totalorder %s16, 0
    %p63 = por %p61, %p62
    %p64 = scmp.ne.s32.totalorder %s50, %s51
    %p65 = scmp.eq.s32.totalorder %s17, 1
    %p66 = por %p64, %p65
    %p68 = scmp.ne.s32.totalorder %s51, %s67
    %p69 = scmp.eq.s32.totalorder %s17, 0
    %p70 = por %p68, %p69
    %s72 = sadd.s32 %s71, 1
    %p75 = scmp.eq.s32.totalorder %s11, 1
    %p76 = scmp.ne.s32.totalorder %s71, %s73
    %p77 = scmp.eq.s32.totalorder %s11, 0
    %p78 = por %p76, %p77
    %p79 = scmp.ne.s32.totalorder %s71, %s73
    %p80 = scmp.eq.s32.totalorder %s16, 1
    %p81 = por %p79, %p80
    %p82 = scmp.ne.s32.totalorder %s73, %s74
    %p83 = scmp.eq.s32.totalorder %s16, 0
    %p84 = por %p82, %p83
    %p85 = scmp.ne.s32.totalorder %s73, %s74
    %p86 = scmp.eq.s32.totalorder %s17, 1
    %p87 = por %p85, %p86
    %p89 = scmp.ne.s32.totalorder %s74, %s88
    %p90 = scmp.eq.s32.totalorder %s17, 0
    %p91 = por %p89, %p90
    %s93 = sadd.s32 %s92, 1
    %p96 = scmp.eq.s32.totalorder %s11, 1
    %p97 = scmp.ne.s32.totalorder %s92, %s94
    %p98 = scmp.eq.s32.totalorder %s11, 0
    %p99 = por %p97, %p98
    %p100 = scmp.ne.s32.totalorder %s92, %s94
    %p101 = scmp.eq.s32.totalorder %s16, 1
    %p102 = por %p100, %p101
    %p103 = scmp.ne.s32.totalorder %s94, %s95
    %p104 = scmp.eq.s32.totalorder %s16, 0
    %p105 = por %p103, %p104
    %p106 = scmp.ne.s32.totalorder %s94, %s95
    %p107 = scmp.eq.s32.totalorder %s17, 1
    %p108 = por %p106, %p107
    %p110 = scmp.ne.s32.totalorder %s95, %s109
    %p111 = scmp.eq.s32.totalorder %s17, 0
    %p112 = por %p110, %p111
    %s114 = sadd.s32 %s113, 1
    %p117 = scmp.eq.s32.totalorder %s11, 1
    %p118 = scmp.ne.s32.totalorder %s113, %s115
    %p119 = scmp.eq.s32.totalorder %s11, 0
    %p120 = por %p118, %p119
    %p121 = scmp.ne.s32.totalorder %s113, %s115
    %p122 = scmp.eq.s32.totalorder %s16, 1
    %p123 = por %p121, %p122
    %p124 = scmp.ne.s32.totalorder %s115, %s116
    %p125 = scmp.eq.s32.totalorder %s16, 0
    %p126 = por %p124, %p125
    %p127 = scmp.ne.s32.totalorder %s115, %s116
    %p128 = scmp.eq.s32.totalorder %s17, 1
    %p129 = por %p127, %p128
    %p131 = scmp.ne.s32.totalorder %s116, %s130
    %p132 = scmp.eq.s32.totalorder %s17, 0
    %p133 = por %p131, %p132
    %s134 = ssub.s32 %s11, %s18
    %p135 = scmp.eq.s32.totalorder %s134, 0
    %s137 = sadd.s32 %s136, 1
    %s138 = scalar_select %p135, %s136, %s137
    %p141 = pneg %p135
    %p142 = scmp.eq.s32.totalorder %s11, 1
    %p143 = por %p141, %p142
    %p144 = scmp.ne.s32.totalorder %s136, %s139
    %p145 = scmp.eq.s32.totalorder %s11, 0
    %p146 = por %p144, %p145
    %p147 = scmp.ne.s32.totalorder %s136, %s139
    %p148 = scmp.eq.s32.totalorder %s16, 1
    %p149 = por %p147, %p148
    %p150 = scmp.ne.s32.totalorder %s139, %s140
    %p151 = scmp.eq.s32.totalorder %s16, 0
    %p152 = por %p150, %p151
    %p153 = scmp.ne.s32.totalorder %s139, %s140
    %p154 = scmp.eq.s32.totalorder %s17, 1
    %p155 = por %p153, %p154
    %p157 = scmp.ne.s32.totalorder %s140, %s156
    %p158 = scmp.eq.s32.totalorder %s17, 0
    %p159 = por %p157, %p158
    %p160 = scmp.le.s32.totalorder 1, %s11
    %p161 = scmp.lt.s32.totalorder %s11, 3
    %p162 = pnand %p160, %p161
    %p163 = pneg %p162
    // Predicated region
    $region9: #{resnet_block_forward.3} parent=5 // pred_check
      _
    $region10: #{resnet_block_forward.3} parent=5 // pred_check_branch
      %165 = sbr.rel (%p162) target = $region12
    $region11: #{resnet_block_forward.3} parent=5 // pred_region
      %s166 = ssub.s32 %s11, 1
      // Predicated region
      $region13: #{resnet_block_forward.3} parent=11 // pred_check
        %p167 = pneg %p84
      $region14: #{resnet_block_forward.3} parent=11 // pred_check_branch
        %169 = sbr.rel (%p167) target = $region16
      $region15: #{resnet_block_forward.3} parent=11 // pred_region
        _
      $region16: #{resnet_block_forward.3} parent=11 // pred_fallthru
        _
      // Predicated region
      $region17: #{resnet_block_forward.3} parent=11 // pred_check
        %p170 = pneg %p105
      $region18: #{resnet_block_forward.3} parent=11 // pred_check_branch
        %172 = sbr.rel (%p170) target = $region20
      $region19: #{resnet_block_forward.3} parent=11 // pred_region
        _
      $region20: #{resnet_block_forward.3} parent=11 // pred_fallthru
        _
      // Predicated region
      $region21: #{resnet_block_forward.3} parent=11 // pred_check
        %p173 = pneg %p126
      $region22: #{resnet_block_forward.3} parent=11 // pred_check_branch
        %175 = sbr.rel (%p173) target = $region24
      $region23: #{resnet_block_forward.3} parent=11 // pred_region
        _
      $region24: #{resnet_block_forward.3} parent=11 // pred_fallthru
        _
    $region12: #{resnet_block_forward.3} parent=5 // pred_fallthru
      _
    %p176 = scmp.lt.s32.totalorder %s11, 2
    // Predicated region
    $region25: #{resnet_block_forward.3} parent=5 // pred_check
      %p177 = pneg %p176
    $region26: #{resnet_block_forward.3} parent=5 // pred_check_branch
      %179 = sbr.rel (%p177) target = $region28
    $region27: #{resnet_block_forward.3} parent=5 // pred_region
      // Predicated region
      $region29: #{resnet_block_forward.3} parent=27 // pred_check
        %p180 = pneg %p31
      $region30: #{resnet_block_forward.3} parent=27 // pred_check_branch
        %182 = sbr.rel (%p180) target = $region32
      $region31: #{resnet_block_forward.3} parent=27 // pred_region
        %p183 = scmp.lt.s32.totalorder %s11, 1
        %s184 = scalar_select %p183, %s11, 1
        %s185 = smul.addr %s184, 20
        %s186 = smul.addr %s185, 4
        %s187 = scalar_lea.vmem %s0, %s186
      $region32: #{resnet_block_forward.3} parent=27 // pred_fallthru
        _
      // Predicated region
      $region33: #{resnet_block_forward.3} parent=27 // pred_check
        %p188 = pneg %p57
      $region34: #{resnet_block_forward.3} parent=27 // pred_check_branch
        %190 = sbr.rel (%p188) target = $region36
      $region35: #{resnet_block_forward.3} parent=27 // pred_region
        %p191 = scmp.lt.s32.totalorder %s11, 1
        %s192 = scalar_select %p191, %s11, 1
        %s193 = smul.addr %s192, 8
        %s194 = smul.addr %s193, 4
        %s195 = scalar_lea.vmem %s1, %s194
      $region36: #{resnet_block_forward.3} parent=27 // pred_fallthru
        _
    $region28: #{resnet_block_forward.3} parent=5 // pred_fallthru
      _
    %p196 = scmp.le.s32.totalorder 1, %s11
    %p197 = scmp.lt.s32.totalorder %s11, 3
    %p198 = pnand %p196, %p197
    %p199 = pneg %p198
    // Predicated region
    $region37: #{resnet_block_forward.3} parent=5 // pred_check
      _
    $region38: #{resnet_block_forward.3} parent=5 // pred_check_branch
      %201 = sbr.rel (%p198) target = $region40
    $region39: #{resnet_block_forward.3} parent=5 // pred_region
      %s202 = ssub.s32 %s11, 1
      %p203 = scmp.lt.s32.totalorder %s16, 1
      %s204 = scalar_select %p203, %s16, 1
      %s205 = smul.addr %s204, 20
      %s206 = smul.addr %s205, 4
      %s207 = scalar_lea.vmem %s0, %s206
      %p208 = pneg %p37
      %p209 = pneg %p34
      %p210 = scmp.lt.s32.totalorder %s16, 1
      %s211 = scalar_select %p210, %s16, 1
      %s212 = smul.addr %s211, 8
      %s213 = smul.addr %s212, 4
      %s214 = scalar_lea.vmem %s1, %s213
      %p215 = pneg %p63
      %p216 = pneg %p60
      %p217 = pneg %p84
      %p218 = pneg %p81
      %p219 = pneg %p105
      %p220 = pneg %p102
      %p221 = pneg %p126
      %p222 = pneg %p123
      %p223 = pneg %p152
      %p224 = pneg %p149
      %p225 = scmp.lt.s32.totalorder %s16, 1
      %s226 = scalar_select %p225, %s16, 1
      %s227 = smul.addr %s226, 8
      %s228 = smul.addr %s227, 8
      %s229 = scalar_lea.vmem %s5, %s228
      %p230 = scmp.lt.s32.totalorder %s16, 1
      %s231 = scalar_select %p230, %s16, 1
      %s232 = smul.addr %s231, 20
      %s233 = smul.addr %s232, 4
      %s234 = scalar_lea.vmem %s0, %s233
      %p235 = scmp.lt.s32.totalorder %s16, 1
      %s236 = scalar_select %p235, %s16, 1
      %s237 = smul.addr %s236, 8
      %s238 = smul.addr %s237, 4
      %s239 = scalar_lea.vmem %s1, %s238
      %p240 = scmp.lt.s32.totalorder %s16, 1
      %s241 = scalar_select %p240, %s16, 1
      %s242 = smul.addr %s241, 8
      %s243 = smul.addr %s242, 8
      %s244 = scalar_lea.vmem %s5, %s243
      %v246 = vld [vmem:[%s234] sm:$0xff]
      %v247 = vld [vmem:[%s234 + $0x8] sm:$0xff]
      %v248 = vld [vmem:[%s234 + $0x10] sm:$0xff]
      %v249 = vld [vmem:[%s234 + $0x18] sm:$0xff]
      %v250 = vld [vmem:[%s234 + $0x20] sm:$0xff]
      %v251 = vld [vmem:[%s234 + $0x28] sm:$0xff]
      %v252 = vld [vmem:[%s234 + $0x30] sm:$0xff]
      %v253 = vld [vmem:[%s234 + $0x38] sm:$0xff]
      %v254 = vld [vmem:[%s2] sm:$0xf]
      %v255 = vld [vmem:[%s2 + $0x4] sm:$0xf]
      %v256 = vld [vmem:[%s2 + $0x8] sm:$0xf]
      %v257 = vld [vmem:[%s2 + $0xc] sm:$0xf]
      %v258 = vld [vmem:[%s2 + $0x10] sm:$0xf]
      %v259 = vld [vmem:[%s2 + $0x14] sm:$0xf]
      %v260 = vld [vmem:[%s2 + $0x18] sm:$0xf]
      %v261 = vld [vmem:[%s2 + $0x1c] sm:$0xf]
      %v262 = vld [vmem:[%s2 + $0x20] sm:$0xf]
      %v263 = vld [vmem:[%s2 + $0x24] sm:$0xf]
      %v264 = vld [vmem:[%s2 + $0x28] sm:$0xf]
      %v265 = vld [vmem:[%s2 + $0x2c] sm:$0xf]
      %v266 = vld [vmem:[%s2 + $0x30] sm:$0xf]
      %v267 = vld [vmem:[%s2 + $0x34] sm:$0xf]
      %v268 = vld [vmem:[%s2 + $0x38] sm:$0xf]
      %v269 = vld [vmem:[%s2 + $0x3c] sm:$0xf]
      %v270 = vld [vmem:[%s2 + $0x40] sm:$0xf]
      %v271 = vld [vmem:[%s2 + $0x44] sm:$0xf]
      %v272 = vld [vmem:[%s2 + $0x48] sm:$0xf]
      %v273 = vld [vmem:[%s2 + $0x4c] sm:$0xf]
      %v274 = vld [vmem:[%s2 + $0x50] sm:$0xf]
      %v275 = vld [vmem:[%s2 + $0x54] sm:$0xf]
      %v276 = vld [vmem:[%s2 + $0x58] sm:$0xf]
      %v277 = vld [vmem:[%s2 + $0x5c] sm:$0xf]
      %v278 = vld [vmem:[%s2 + $0x60] sm:$0xf]
      %v279 = vld [vmem:[%s2 + $0x64] sm:$0xf]
      %v280 = vld [vmem:[%s2 + $0x68] sm:$0xf]
      %v281 = vld [vmem:[%s2 + $0x6c] sm:$0xf]
      %v282 = vld [vmem:[%s2 + $0x70] sm:$0xf]
      %v283 = vld [vmem:[%s2 + $0x74] sm:$0xf]
      %v284 = vld [vmem:[%s2 + $0x78] sm:$0xf]
      %v285 = vld [vmem:[%s2 + $0x7c] sm:$0xf]
      %s286 = scalar_lea.vmem %s234, 8
      %v287 = vld [vmem:[%s286] sm:$0xff]
      %v288 = vld [vmem:[%s286 + $0x8] sm:$0xff]
      %v289 = vld [vmem:[%s286 + $0x10] sm:$0xff]
      %v290 = vld [vmem:[%s286 + $0x18] sm:$0xff]
      %v291 = vld [vmem:[%s286 + $0x20] sm:$0xff]
      %v292 = vld [vmem:[%s286 + $0x28] sm:$0xff]
      %v293 = vld [vmem:[%s286 + $0x30] sm:$0xff]
      %v294 = vld [vmem:[%s286 + $0x38] sm:$0xff]
      %s295 = scalar_lea.vmem %s2, 128
      %v296 = vld [vmem:[%s295] sm:$0xf]
      %v297 = vld [vmem:[%s295 + $0x4] sm:$0xf]
      %v298 = vld [vmem:[%s295 + $0x8] sm:$0xf]
      %v299 = vld [vmem:[%s295 + $0xc] sm:$0xf]
      %v300 = vld [vmem:[%s295 + $0x10] sm:$0xf]
      %v301 = vld [vmem:[%s295 + $0x14] sm:$0xf]
      %v302 = vld [vmem:[%s295 + $0x18] sm:$0xf]
      %v303 = vld [vmem:[%s295 + $0x1c] sm:$0xf]
      %v304 = vld [vmem:[%s295 + $0x20] sm:$0xf]
      %v305 = vld [vmem:[%s295 + $0x24] sm:$0xf]
      %v306 = vld [vmem:[%s295 + $0x28] sm:$0xf]
      %v307 = vld [vmem:[%s295 + $0x2c] sm:$0xf]
      %v308 = vld [vmem:[%s295 + $0x30] sm:$0xf]
      %v309 = vld [vmem:[%s295 + $0x34] sm:$0xf]
      %v310 = vld [vmem:[%s295 + $0x38] sm:$0xf]
      %v311 = vld [vmem:[%s295 + $0x3c] sm:$0xf]
      %v312 = vld [vmem:[%s295 + $0x40] sm:$0xf]
      %v313 = vld [vmem:[%s295 + $0x44] sm:$0xf]
      %v314 = vld [vmem:[%s295 + $0x48] sm:$0xf]
      %v315 = vld [vmem:[%s295 + $0x4c] sm:$0xf]
      %v316 = vld [vmem:[%s295 + $0x50] sm:$0xf]
      %v317 = vld [vmem:[%s295 + $0x54] sm:$0xf]
      %v318 = vld [vmem:[%s295 + $0x58] sm:$0xf]
      %v319 = vld [vmem:[%s295 + $0x5c] sm:$0xf]
      %v320 = vld [vmem:[%s295 + $0x60] sm:$0xf]
      %v321 = vld [vmem:[%s295 + $0x64] sm:$0xf]
      %v322 = vld [vmem:[%s295 + $0x68] sm:$0xf]
      %v323 = vld [vmem:[%s295 + $0x6c] sm:$0xf]
      %v324 = vld [vmem:[%s295 + $0x70] sm:$0xf]
      %v325 = vld [vmem:[%s295 + $0x74] sm:$0xf]
      %v326 = vld [vmem:[%s295 + $0x78] sm:$0xf]
      %v327 = vld [vmem:[%s295 + $0x7c] sm:$0xf]
      %v336 = vunpack.c.l.b16 %v287
      %v337 = vunpack.c.h.b16 %v287
      %v338 = vunpack.c.l.b16 %v288
      %v339 = vunpack.c.h.b16 %v288
      %v340 = vunpack.c.l.b16 %v289
      %v341 = vunpack.c.h.b16 %v289
      %v342 = vunpack.c.l.b16 %v290
      %v343 = vunpack.c.h.b16 %v290
      %v344 = vunpack.c.l.b16 %v291
      %v345 = vunpack.c.h.b16 %v291
      %v346 = vunpack.c.l.b16 %v292
      %v347 = vunpack.c.h.b16 %v292
      %v348 = vunpack.c.l.b16 %v293
      %v349 = vunpack.c.h.b16 %v293
      %v350 = vunpack.c.l.b16 %v294
      %v351 = vunpack.c.h.b16 %v294
      %v352 = vpack.c.b16 %v338, %v336
      %v353 = vpack.c.b16 %v339, %v337
      %v354 = vpack.c.b16 %v342, %v340
      %v355 = vpack.c.b16 %v343, %v341
      %v356 = vpack.c.b16 %v346, %v344
      %v357 = vpack.c.b16 %v347, %v345
      %v358 = vpack.c.b16 %v350, %v348
      %v359 = vpack.c.b16 %v351, %v349
      %v400 = vunpack.c.l.b16 %v296
      %v401 = vunpack.c.l.b16 %v297
      %v402 = vunpack.c.l.b16 %v298
      %v403 = vunpack.c.l.b16 %v299
      %v404 = vunpack.c.l.b16 %v300
      %v405 = vunpack.c.l.b16 %v301
      %v406 = vunpack.c.l.b16 %v302
      %v407 = vunpack.c.l.b16 %v303
      %v408 = vunpack.c.l.b16 %v304
      %v409 = vunpack.c.l.b16 %v305
      %v410 = vunpack.c.l.b16 %v306
      %v411 = vunpack.c.l.b16 %v307
      %v412 = vunpack.c.l.b16 %v308
      %v413 = vunpack.c.l.b16 %v309
      %v414 = vunpack.c.l.b16 %v310
      %v415 = vunpack.c.l.b16 %v311
      %v416 = vunpack.c.l.b16 %v312
      %v417 = vunpack.c.l.b16 %v313
      %v418 = vunpack.c.l.b16 %v314
      %v419 = vunpack.c.l.b16 %v315
      %v420 = vunpack.c.l.b16 %v316
      %v421 = vunpack.c.l.b16 %v317
      %v422 = vunpack.c.l.b16 %v318
      %v423 = vunpack.c.l.b16 %v319
      %v424 = vunpack.c.l.b16 %v320
      %v425 = vunpack.c.l.b16 %v321
      %v426 = vunpack.c.l.b16 %v322
      %v427 = vunpack.c.l.b16 %v323
      %v428 = vunpack.c.l.b16 %v324
      %v429 = vunpack.c.l.b16 %v325
      %v430 = vunpack.c.l.b16 %v326
      %v431 = vunpack.c.l.b16 %v327
      %v432 = vpack.c.b16 %v401, %v400
      %v433 = vpack.c.b16 %v403, %v402
      %v434 = vpack.c.b16 %v405, %v404
      %v435 = vpack.c.b16 %v407, %v406
      %v436 = vpack.c.b16 %v409, %v408
      %v437 = vpack.c.b16 %v411, %v410
      %v438 = vpack.c.b16 %v413, %v412
      %v439 = vpack.c.b16 %v415, %v414
      %v440 = vpack.c.b16 %v417, %v416
      %v441 = vpack.c.b16 %v419, %v418
      %v442 = vpack.c.b16 %v421, %v420
      %v443 = vpack.c.b16 %v423, %v422
      %v444 = vpack.c.b16 %v425, %v424
      %v445 = vpack.c.b16 %v427, %v426
      %v446 = vpack.c.b16 %v429, %v428
      %v447 = vpack.c.b16 %v431, %v430
      %464 = vmatprep.subr.bf16.mxu0 0
      %465 = vmatpush1.bf16.msra.mxu0 %v432
      %466 = vmatprep.subr.bf16.mxu0 0
      %467 = vmatpush1.bf16.msra.mxu0 %v433
      %468 = vmatprep.subr.bf16.mxu0 0
      %469 = vmatpush1.bf16.msra.mxu0 %v434
      %470 = vmatprep.subr.bf16.mxu0 0
      %471 = vmatpush1.bf16.msra.mxu0 %v435
      %472 = vmatprep.subr.bf16.mxu0 0
      %473 = vmatpush1.bf16.msra.mxu0 %v436
      %474 = vmatprep.subr.bf16.mxu0 0
      %475 = vmatpush1.bf16.msra.mxu0 %v437
      %476 = vmatprep.subr.bf16.mxu0 0
      %477 = vmatpush1.bf16.msra.mxu0 %v438
      %478 = vmatprep.subr.bf16.mxu0 0
      %479 = vmatpush1.bf16.msra.mxu0 %v439
      %480 = vmatprep.subr.bf16.mxu0 0
      %481 = vmatpush1.bf16.msra.mxu0 %v440
      %482 = vmatprep.subr.bf16.mxu0 0
      %483 = vmatpush1.bf16.msra.mxu0 %v441
      %484 = vmatprep.subr.bf16.mxu0 0
      %485 = vmatpush1.bf16.msra.mxu0 %v442
      %486 = vmatprep.subr.bf16.mxu0 0
      %487 = vmatpush1.bf16.msra.mxu0 %v443
      %488 = vmatprep.subr.bf16.mxu0 0
      %489 = vmatpush1.bf16.msra.mxu0 %v444
      %490 = vmatprep.subr.bf16.mxu0 0
      %491 = vmatpush1.bf16.msra.mxu0 %v445
      %492 = vmatprep.subr.bf16.mxu0 0
      %493 = vmatpush1.bf16.msra.mxu0 %v446
      %494 = vmatprep.subr.bf16.mxu0 0
      %495 = vmatpush1.bf16.msra.mxu0 %v447
      %496 = vmatprep.mubr.bf16.mxu0 %v353
      %497 = vmatmul.mubr.bf16.gmra.mrb[0].mxu0 %v352
      %v498 = vpop.f32.mrb[0].mxu0
      %v499 = vadd.f32 0.0, %v498
      %v500 = vpop.f32.mrb[0].mxu0
      %v501 = vpop.f32.mrb[0].mxu0
      %v502 = vadd.f32 0.0, %v501
      %v503 = vpop.f32.mrb[0].mxu0
      %504 = vmatprep.mubr.bf16.mxu0 %v355
      %505 = vmatmul.mubr.bf16.gmra.mrb[0].mxu0 %v354
      %v506 = vpop.f32.mrb[0].mxu0
      %v507 = vadd.f32 0.0, %v506
      %v508 = vpop.f32.mrb[0].mxu0
      %v509 = vpop.f32.mrb[0].mxu0
      %v510 = vadd.f32 0.0, %v509
      %v511 = vpop.f32.mrb[0].mxu0
      %512 = vmatprep.mubr.bf16.mxu0 %v357
      %513 = vmatmul.mubr.bf16.gmra.mrb[0].mxu0 %v356
      %v514 = vpop.f32.mrb[0].mxu0
      %v515 = vadd.f32 0.0, %v514
      %v516 = vpop.f32.mrb[0].mxu0
      %v517 = vpop.f32.mrb[0].mxu0
      %v518 = vadd.f32 0.0, %v517
      %v519 = vpop.f32.mrb[0].mxu0
      %520 = vmatprep.mubr.bf16.mxu0 %v359
      %521 = vmatmul.mubr.bf16.gmra.mrb[0].mxu0 %v358
      %v522 = vpop.f32.mrb[0].mxu0
      %v523 = vadd.f32 0.0, %v522
      %v524 = vpop.f32.mrb[0].mxu0
      %v525 = vpop.f32.mrb[0].mxu0
      %v526 = vadd.f32 0.0, %v525
      %v527 = vpop.f32.mrb[0].mxu0
      %528 = vdwg.mxu0
      %v537 = vunpack.c.l.b16 %v246
      %v538 = vunpack.c.h.b16 %v246
      %v539 = vunpack.c.l.b16 %v247
      %v540 = vunpack.c.h.b16 %v247
      %v541 = vunpack.c.l.b16 %v248
      %v542 = vunpack.c.h.b16 %v248
      %v543 = vunpack.c.l.b16 %v249
      %v544 = vunpack.c.h.b16 %v249
      %v545 = vunpack.c.l.b16 %v250
      %v546 = vunpack.c.h.b16 %v250
      %v547 = vunpack.c.l.b16 %v251
      %v548 = vunpack.c.h.b16 %v251
      %v549 = vunpack.c.l.b16 %v252
      %v550 = vunpack.c.h.b16 %v252
      %v551 = vunpack.c.l.b16 %v253
      %v552 = vunpack.c.h.b16 %v253
      %v553 = vpack.c.b16 %v539, %v537
      %v554 = vpack.c.b16 %v540, %v538
      %v555 = vpack.c.b16 %v543, %v541
      %v556 = vpack.c.b16 %v544, %v542
      %v557 = vpack.c.b16 %v547, %v545
      %v558 = vpack.c.b16 %v548, %v546
      %v559 = vpack.c.b16 %v551, %v549
      %v560 = vpack.c.b16 %v552, %v550
      %v601 = vunpack.c.l.b16 %v254
      %v602 = vunpack.c.l.b16 %v255
      %v603 = vunpack.c.l.b16 %v256
      %v604 = vunpack.c.l.b16 %v257
      %v605 = vunpack.c.l.b16 %v258
      %v606 = vunpack.c.l.b16 %v259
      %v607 = vunpack.c.l.b16 %v260
      %v608 = vunpack.c.l.b16 %v261
      %v609 = vunpack.c.l.b16 %v262
      %v610 = vunpack.c.l.b16 %v263
      %v611 = vunpack.c.l.b16 %v264
      %v612 = vunpack.c.l.b16 %v265
      %v613 = vunpack.c.l.b16 %v266
      %v614 = vunpack.c.l.b16 %v267
      %v615 = vunpack.c.l.b16 %v268
      %v616 = vunpack.c.l.b16 %v269
      %v617 = vunpack.c.l.b16 %v270
      %v618 = vunpack.c.l.b16 %v271
      %v619 = vunpack.c.l.b16 %v272
      %v620 = vunpack.c.l.b16 %v273
      %v621 = vunpack.c.l.b16 %v274
      %v622 = vunpack.c.l.b16 %v275
      %v623 = vunpack.c.l.b16 %v276
      %v624 = vunpack.c.l.b16 %v277
      %v625 = vunpack.c.l.b16 %v278
      %v626 = vunpack.c.l.b16 %v279
      %v627 = vunpack.c.l.b16 %v280
      %v628 = vunpack.c.l.b16 %v281
      %v629 = vunpack.c.l.b16 %v282
      %v630 = vunpack.c.l.b16 %v283
      %v631 = vunpack.c.l.b16 %v284
      %v632 = vunpack.c.l.b16 %v285
      %v633 = vpack.c.b16 %v602, %v601
      %v634 = vpack.c.b16 %v604, %v603
      %v635 = vpack.c.b16 %v606, %v605
      %v636 = vpack.c.b16 %v608, %v607
      %v637 = vpack.c.b16 %v610, %v609
      %v638 = vpack.c.b16 %v612, %v611
      %v639 = vpack.c.b16 %v614, %v613
      %v640 = vpack.c.b16 %v616, %v615
      %v641 = vpack.c.b16 %v618, %v617
      %v642 = vpack.c.b16 %v620, %v619
      %v643 = vpack.c.b16 %v622, %v621
      %v644 = vpack.c.b16 %v624, %v623
      %v645 = vpack.c.b16 %v626, %v625
      %v646 = vpack.c.b16 %v628, %v627
      %v647 = vpack.c.b16 %v630, %v629
      %v648 = vpack.c.b16 %v632, %v631
      %665 = vmatprep.subr.bf16.mxu0 0
      %666 = vmatpush1.bf16.msra.mxu0 %v633
      %667 = vmatprep.subr.bf16.mxu0 0
      %668 = vmatpush1.bf16.msra.mxu0 %v634
      %669 = vmatprep.subr.bf16.mxu0 0
      %670 = vmatpush1.bf16.msra.mxu0 %v635
      %671 = vmatprep.subr.bf16.mxu0 0
      %672 = vmatpush1.bf16.msra.mxu0 %v636
      %673 = vmatprep.subr.bf16.mxu0 0
      %674 = vmatpush1.bf16.msra.mxu0 %v637
      %675 = vmatprep.subr.bf16.mxu0 0
      %676 = vmatpush1.bf16.msra.mxu0 %v638
      %677 = vmatprep.subr.bf16.mxu0 0
      %678 = vmatpush1.bf16.msra.mxu0 %v639
      %679 = vmatprep.subr.bf16.mxu0 0
      %680 = vmatpush1.bf16.msra.mxu0 %v640
      %681 = vmatprep.subr.bf16.mxu0 0
      %682 = vmatpush1.bf16.msra.mxu0 %v641
      %683 = vmatprep.subr.bf16.mxu0 0
      %684 = vmatpush1.bf16.msra.mxu0 %v642
      %685 = vmatprep.subr.bf16.mxu0 0
      %686 = vmatpush1.bf16.msra.mxu0 %v643
      %687 = vmatprep.subr.bf16.mxu0 0
      %688 = vmatpush1.bf16.msra.mxu0 %v644
      %689 = vmatprep.subr.bf16.mxu0 0
      %690 = vmatpush1.bf16.msra.mxu0 %v645
      %691 = vmatprep.subr.bf16.mxu0 0
      %692 = vmatpush1.bf16.msra.mxu0 %v646
      %693 = vmatprep.subr.bf16.mxu0 0
      %694 = vmatpush1.bf16.msra.mxu0 %v647
      %695 = vmatprep.subr.bf16.mxu0 0
      %696 = vmatpush1.bf16.msra.mxu0 %v648
      %697 = vmatprep.mubr.bf16.mxu0 %v554
      %698 = vmatmul.mubr.bf16.gmra.mrb[0].mxu0 %v553
      %v699 = vpop.f32.mrb[0].mxu0
      %v700 = vadd.f32 %v499, %v699
      %v701 = vpop.f32.mrb[0].mxu0
      %v702 = vpop.f32.mrb[0].mxu0
      %v703 = vadd.f32 %v502, %v702
      %v704 = vpop.f32.mrb[0].mxu0
      %705 = vmatprep.mubr.bf16.mxu0 %v556
      %706 = vmatmul.mubr.bf16.gmra.mrb[0].mxu0 %v555
      %v707 = vpop.f32.mrb[0].mxu0
      %v708 = vadd.f32 %v507, %v707
      %v709 = vpop.f32.mrb[0].mxu0
      %v710 = vpop.f32.mrb[0].mxu0
      %v711 = vadd.f32 %v510, %v710
      %v712 = vpop.f32.mrb[0].mxu0
      %713 = vmatprep.mubr.bf16.mxu0 %v558
      %714 = vmatmul.mubr.bf16.gmra.mrb[0].mxu0 %v557
      %v715 = vpop.f32.mrb[0].mxu0
      %v716 = vadd.f32 %v515, %v715
      %v717 = vpop.f32.mrb[0].mxu0
      %v718 = vpop.f32.mrb[0].mxu0
      %v719 = vadd.f32 %v518, %v718
      %v720 = vpop.f32.mrb[0].mxu0
      %721 = vmatprep.mubr.bf16.mxu0 %v560
      %722 = vmatmul.mubr.bf16.gmra.mrb[0].mxu0 %v559
      %v723 = vpop.f32.mrb[0].mxu0
      %v724 = vadd.f32 %v523, %v723
      %v725 = vpop.f32.mrb[0].mxu0
      %v726 = vpop.f32.mrb[0].mxu0
      %v727 = vadd.f32 %v526, %v726
      %v728 = vpop.f32.mrb[0].mxu0
      %729 = vdwg.mxu0
      %s730 = scalar_lea.vmem %s234, 16
      %v731 = vld [vmem:[%s730] sm:$0xff]
      %v732 = vld [vmem:[%s730 + $0x8] sm:$0xff]
      %v733 = vld [vmem:[%s730 + $0x10] sm:$0xff]
      %v734 = vld [vmem:[%s730 + $0x18] sm:$0xff]
      %v735 = vld [vmem:[%s730 + $0x20] sm:$0xff]
      %v736 = vld [vmem:[%s730 + $0x28] sm:$0xff]
      %v737 = vld [vmem:[%s730 + $0x30] sm:$0xff]
      %v738 = vld [vmem:[%s730 + $0x38] sm:$0xff]
      %s739 = scalar_lea.vmem %s2, 256
      %v740 = vld [vmem:[%s739] sm:$0xf]
      %v741 = vld [vmem:[%s739 + $0x4] sm:$0xf]
      %v742 = vld [vmem:[%s739 + $0x8] sm:$0xf]
      %v743 = vld [vmem:[%s739 + $0xc] sm:$0xf]
      %v744 = vld [vmem:[%s739 + $0x10] sm:$0xf]
      %v745 = vld [vmem:[%s739 + $0x14] sm:$0xf]
      %v746 = vld [vmem:[%s739 + $0x18] sm:$0xf]
      %v747 = vld [vmem:[%s739 + $0x1c] sm:$0xf]
      %v748 = vld [vmem:[%s739 + $0x20] sm:$0xf]
      %v749 = vld [vmem:[%s739 + $0x24] sm:$0xf]
      %v750 = vld [vmem:[%s739 + $0x28] sm:$0xf]
      %v751 = vld [vmem:[%s739 + $0x2c] sm:$0xf]
      %v752 = vld [vmem:[%s739 + $0x30] sm:$0xf]
      %v753 = vld [vmem:[%s739 + $0x34] sm:$0xf]
      %v754 = vld [vmem:[%s739 + $0x38] sm:$0xf]
      %v755 = vld [vmem:[%s739 + $0x3c] sm:$0xf]
      %v756 = vld [vmem:[%s739 + $0x40] sm:$0xf]
      %v757 = vld [vmem:[%s739 + $0x44] sm:$0xf]
      %v758 = vld [vmem:[%s739 + $0x48] sm:$0xf]
      %v759 = vld [vmem:[%s739 + $0x4c] sm:$0xf]
      %v760 = vld [vmem:[%s739 + $0x50] sm:$0xf]
      %v761 = vld [vmem:[%s739 + $0x54] sm:$0xf]
      %v762 = vld [vmem:[%s739 + $0x58] sm:$0xf]
      %v763 = vld [vmem:[%s739 + $0x5c] sm:$0xf]
      %v764 = vld [vmem:[%s739 + $0x60] sm:$0xf]
      %v765 = vld [vmem:[%s739 + $0x64] sm:$0xf]
      %v766 = vld [vmem:[%s739 + $0x68] sm:$0xf]
      %v767 = vld [vmem:[%s739 + $0x6c] sm:$0xf]
      %v768 = vld [vmem:[%s739 + $0x70] sm:$0xf]
      %v769 = vld [vmem:[%s739 + $0x74] sm:$0xf]
      %v770 = vld [vmem:[%s739 + $0x78] sm:$0xf]
      %v771 = vld [vmem:[%s739 + $0x7c] sm:$0xf]
      %v780 = vunpack.c.l.b16 %v731
      %v781 = vunpack.c.h.b16 %v731
      %v782 = vunpack.c.l.b16 %v732
      %v783 = vunpack.c.h.b16 %v732
      %v784 = vunpack.c.l.b16 %v733
      %v785 = vunpack.c.h.b16 %v733
      %v786 = vunpack.c.l.b16 %v734
      %v787 = vunpack.c.h.b16 %v734
      %v788 = vunpack.c.l.b16 %v735
      %v789 = vunpack.c.h.b16 %v735
      %v790 = vunpack.c.l.b16 %v736
      %v791 = vunpack.c.h.b16 %v736
      %v792 = vunpack.c.l.b16 %v737
      %v793 = vunpack.c.h.b16 %v737
      %v794 = vunpack.c.l.b16 %v738
      %v795 = vunpack.c.h.b16 %v738
      %v796 = vpack.c.b16 %v782, %v780
      %v797 = vpack.c.b16 %v783, %v781
      %v798 = vpack.c.b16 %v786, %v784
      %v799 = vpack.c.b16 %v787, %v785
      %v800 = vpack.c.b16 %v790, %v788
      %v801 = vpack.c.b16 %v791, %v789
      %v802 = vpack.c.b16 %v794, %v792
      %v803 = vpack.c.b16 %v795, %v793
      %v844 = vunpack.c.l.b16 %v740
      %v845 = vunpack.c.l.b16 %v741
      %v846 = vunpack.c.l.b16 %v742
      %v847 = vunpack.c.l.b16 %v743
      %v848 = vunpack.c.l.b16 %v744
      %v849 = vunpack.c.l.b16 %v745
      %v850 = vunpack.c.l.b16 %v746
      %v851 = vunpack.c.l.b16 %v747
      %v852 = vunpack.c.l.b16 %v748
      %v853 = vunpack.c.l.b16 %v749
      %v854 = vunpack.c.l.b16 %v750
      %v855 = vunpack.c.l.b16 %v751
      %v856 = vunpack.c.l.b16 %v752
      %v857 = vunpack.c.l.b16 %v753
      %v858 = vunpack.c.l.b16 %v754
      %v859 = vunpack.c.l.b16 %v755
      %v860 = vunpack.c.l.b16 %v756
      %v861 = vunpack.c.l.b16 %v757
      %v862 = vunpack.c.l.b16 %v758
      %v863 = vunpack.c.l.b16 %v759
      %v864 = vunpack.c.l.b16 %v760
      %v865 = vunpack.c.l.b16 %v761
      %v866 = vunpack.c.l.b16 %v762
      %v867 = vunpack.c.l.b16 %v763
      %v868 = vunpack.c.l.b16 %v764
      %v869 = vunpack.c.l.b16 %v765
      %v870 = vunpack.c.l.b16 %v766
      %v871 = vunpack.c.l.b16 %v767
      %v872 = vunpack.c.l.b16 %v768
      %v873 = vunpack.c.l.b16 %v769
      %v874 = vunpack.c.l.b16 %v770
      %v875 = vunpack.c.l.b16 %v771
      %v876 = vpack.c.b16 %v845, %v844
      %v877 = vpack.c.b16 %v847, %v846
      %v878 = vpack.c.b16 %v849, %v848
      %v879 = vpack.c.b16 %v851, %v850
      %v880 = vpack.c.b16 %v853, %v852
      %v881 = vpack.c.b16 %v855, %v854
      %v882 = vpack.c.b16 %v857, %v856
      %v883 = vpack.c.b16 %v859, %v858
      %v884 = vpack.c.b16 %v861, %v860
      %v885 = vpack.c.b16 %v863, %v862
      %v886 = vpack.c.b16 %v865, %v864
      %v887 = vpack.c.b16 %v867, %v866
      %v888 = vpack.c.b16 %v869, %v868
      %v889 = vpack.c.b16 %v871, %v870
      %v890 = vpack.c.b16 %v873, %v872
      %v891 = vpack.c.b16 %v875, %v874
      %908 = vmatprep.subr.bf16.mxu0 0
      %909 = vmatpush1.bf16.msra.mxu0 %v876
      %910 = vmatprep.subr.bf16.mxu0 0
      %911 = vmatpush1.bf16.msra.mxu0 %v877
      %912 = vmatprep.subr.bf16.mxu0 0
      %913 = vmatpush1.bf16.msra.mxu0 %v878
      %914 = vmatprep.subr.bf16.mxu0 0
      %915 = vmatpush1.bf16.msra.mxu0 %v879
      %916 = vmatprep.subr.bf16.mxu0 0
      %917 = vmatpush1.bf16.msra.mxu0 %v880
      %918 = vmatprep.subr.bf16.mxu0 0
      %919 = vmatpush1.bf16.msra.mxu0 %v881
      %920 = vmatprep.subr.bf16.mxu0 0
      %921 = vmatpush1.bf16.msra.mxu0 %v882
      %922 = vmatprep.subr.bf16.mxu0 0
      %923 = vmatpush1.bf16.msra.mxu0 %v883
      %924 = vmatprep.subr.bf16.mxu0 0
      %925 = vmatpush1.bf16.msra.mxu0 %v884
      %926 = vmatprep.subr.bf16.mxu0 0
      %927 = vmatpush1.bf16.msra.mxu0 %v885
      %928 = vmatprep.subr.bf16.mxu0 0
      %929 = vmatpush1.bf16.msra.mxu0 %v886
      %930 = vmatprep.subr.bf16.mxu0 0
      %931 = vmatpush1.bf16.msra.mxu0 %v887
      %932 = vmatprep.subr.bf16.mxu0 0
      %933 = vmatpush1.bf16.msra.mxu0 %v888
      %934 = vmatprep.subr.bf16.mxu0 0
      %935 = vmatpush1.bf16.msra.mxu0 %v889
      %936 = vmatprep.subr.bf16.mxu0 0
      %937 = vmatpush1.bf16.msra.mxu0 %v890
      %938 = vmatprep.subr.bf16.mxu0 0
      %939 = vmatpush1.bf16.msra.mxu0 %v891
      %940 = vmatprep.mubr.bf16.mxu0 %v797
      %941 = vmatmul.mubr.bf16.gmra.mrb[0].mxu0 %v796
      %v942 = vpop.f32.mrb[0].mxu0
      %v943 = vadd.f32 0.0, %v942
      %v944 = vpop.f32.mrb[0].mxu0
      %v945 = vpop.f32.mrb[0].mxu0
      %v946 = vadd.f32 0.0, %v945
      %v947 = vpop.f32.mrb[0].mxu0
      %948 = vmatprep.mubr.bf16.mxu0 %v799
      %949 = vmatmul.mubr.bf16.gmra.mrb[0].mxu0 %v798
      %v950 = vpop.f32.mrb[0].mxu0
      %v951 = vadd.f32 0.0, %v950
      %v952 = vpop.f32.mrb[0].mxu0
      %v953 = vpop.f32.mrb[0].mxu0
      %v954 = vadd.f32 0.0, %v953
      %v955 = vpop.f32.mrb[0].mxu0
      %956 = vmatprep.mubr.bf16.mxu0 %v801
      %957 = vmatmul.mubr.bf16.gmra.mrb[0].mxu0 %v800
      %v958 = vpop.f32.mrb[0].mxu0
      %v959 = vadd.f32 0.0, %v958
      %v960 = vpop.f32.mrb[0].mxu0
      %v961 = vpop.f32.mrb[0].mxu0
      %v962 = vadd.f32 0.0, %v961
      %v963 = vpop.f32.mrb[0].mxu0
      %964 = vmatprep.mubr.bf16.mxu0 %v803
      %965 = vmatmul.mubr.bf16.gmra.mrb[0].mxu0 %v802
      %v966 = vpop.f32.mrb[0].mxu0
      %v967 = vadd.f32 0.0, %v966
      %v968 = vpop.f32.mrb[0].mxu0
      %v969 = vpop.f32.mrb[0].mxu0
      %v970 = vadd.f32 0.0, %v969
      %v971 = vpop.f32.mrb[0].mxu0
      %972 = vdwg.mxu0
      %v973 = vadd.f32 %v700, %v943
      %v974 = vadd.f32 %v703, %v946
      %v975 = vadd.f32 %v708, %v951
      %v976 = vadd.f32 %v711, %v954
      %v977 = vadd.f32 %v716, %v959
      %v978 = vadd.f32 %v719, %v962
      %v979 = vadd.f32 %v724, %v967
      %v980 = vadd.f32 %v727, %v970
      %v981 = vld [vmem:[%s3] sm:$0x1]
      %v983 = vlaneseq
      %v984 = vshrl.u32 %v983, 7
      %v985 = vsub.s32 0, %v984
      %v986 = vrot.slane %v981, %v985
      %v988 = vmul.f32 %v973, %v986
      %v989 = vmul.f32 %v974, %v986
      %v990 = vmul.f32 %v975, %v986
      %v991 = vmul.f32 %v976, %v986
      %v992 = vmul.f32 %v977, %v986
      %v993 = vmul.f32 %v978, %v986
      %v994 = vmul.f32 %v979, %v986
      %v995 = vmul.f32 %v980, %v986
      %v996 = vld [vmem:[%s4] sm:$0x1]
      %v998 = vlaneseq
      %v999 = vshrl.u32 %v998, 7
      %v1000 = vsub.s32 0, %v999
      %v1001 = vrot.slane %v996, %v1000
      %v1003 = vadd.f32 %v988, %v1001
      %v1004 = vadd.f32 %v989, %v1001
      %v1005 = vadd.f32 %v990, %v1001
      %v1006 = vadd.f32 %v991, %v1001
      %v1007 = vadd.f32 %v992, %v1001
      %v1008 = vadd.f32 %v993, %v1001
      %v1009 = vadd.f32 %v994, %v1001
      %v1010 = vadd.f32 %v995, %v1001
      %v1011 = vlaneseq
      %v1012 = vand.u32 %v1011, 127
      %v1013 = vld [vmem:[%s239] sm:$0xf]
      %v1014 = vld [vmem:[%s239 + $0x4] sm:$0xf]
      %v1015 = vld [vmem:[%s239 + $0x8] sm:$0xf]
      %v1016 = vld [vmem:[%s239 + $0xc] sm:$0xf]
      %v1017 = vld [vmem:[%s239 + $0x10] sm:$0xf]
      %v1018 = vld [vmem:[%s239 + $0x14] sm:$0xf]
      %v1019 = vld [vmem:[%s239 + $0x18] sm:$0xf]
      %v1020 = vld [vmem:[%s239 + $0x1c] sm:$0xf]
      %v1021 = vunpack.c.l.bf16 %v1013
      %v1022 = vunpack.c.l.bf16 %v1014
      %v1023 = vunpack.c.l.bf16 %v1015
      %v1024 = vunpack.c.l.bf16 %v1016
      %v1025 = vunpack.c.l.bf16 %v1017
      %v1026 = vunpack.c.l.bf16 %v1018
      %v1027 = vunpack.c.l.bf16 %v1019
      %v1028 = vunpack.c.l.bf16 %v1020
      %vm1029 = vcmp.lt.s32.totalorder %v1012, 64
      %v1030 = vsel %vm1029, 1, 0
      %vm1031 = vcmp.eq.s32.totalorder %v1030, 1
      %v1032 = vsel %vm1031, %v1021, 0.0
      %v1033 = vsel %vm1031, %v1022, 0.0
      %v1034 = vsel %vm1031, %v1023, 0.0
      %v1035 = vsel %vm1031, %v1024, 0.0
      %v1036 = vsel %vm1031, %v1025, 0.0
      %v1037 = vsel %vm1031, %v1026, 0.0
      %v1038 = vsel %vm1031, %v1027, 0.0
      %v1039 = vsel %vm1031, %v1028, 0.0
      %v1040 = vadd.f32 %v1003, %v1032
      %v1041 = vadd.f32 %v1004, %v1033
      %v1042 = vadd.f32 %v1005, %v1034
      %v1043 = vadd.f32 %v1006, %v1035
      %v1044 = vadd.f32 %v1007, %v1036
      %v1045 = vadd.f32 %v1008, %v1037
      %v1046 = vadd.f32 %v1009, %v1038
      %v1047 = vadd.f32 %v1010, %v1039
      %v1048 = vmax.f32 %v1040, 0.0
      %v1049 = vmax.f32 %v1041, 0.0
      %v1050 = vmax.f32 %v1042, 0.0
      %v1051 = vmax.f32 %v1043, 0.0
      %v1052 = vmax.f32 %v1044, 0.0
      %v1053 = vmax.f32 %v1045, 0.0
      %v1054 = vmax.f32 %v1046, 0.0
      %v1055 = vmax.f32 %v1047, 0.0
      %1056 = vst [vmem:[%s244] sm:$0xff] %v1048
      %1057 = vst [vmem:[%s244 + $0x8] sm:$0xff] %v1049
      %1058 = vst [vmem:[%s244 + $0x10] sm:$0xff] %v1050
      %1059 = vst [vmem:[%s244 + $0x18] sm:$0xff] %v1051
      %1060 = vst [vmem:[%s244 + $0x20] sm:$0xff] %v1052
      %1061 = vst [vmem:[%s244 + $0x28] sm:$0xff] %v1053
      %1062 = vst [vmem:[%s244 + $0x30] sm:$0xff] %v1054
      %1063 = vst [vmem:[%s244 + $0x38] sm:$0xff] %v1055
      %p1064 = scmp.lt.s32.totalorder %s16, 1
      %s1065 = scalar_select %p1064, %s16, 1
      %s1066 = smul.addr %s1065, 8
      %s1067 = smul.addr %s1066, 8
      %s1068 = scalar_lea.vmem %s5, %s1067
      // Predicated region
      $region41: #{resnet_block_forward.3} parent=39 // pred_check
        %p1069 = pneg %p149
      $region42: #{resnet_block_forward.3} parent=39 // pred_check_branch
        %1071 = sbr.rel (%p1069) target = $region44
      $region43: #{resnet_block_forward.3} parent=39 // pred_region
        _
      $region44: #{resnet_block_forward.3} parent=39 // pred_fallthru
        _
    $region40: #{resnet_block_forward.3} parent=5 // pred_fallthru
      _
    %p1072 = scmp.le.s32.totalorder 2, %s11
    // Predicated region
    $region45: #{resnet_block_forward.3} parent=5 // pred_check
      %p1073 = pneg %p1072
    $region46: #{resnet_block_forward.3} parent=5 // pred_check_branch
      %1075 = sbr.rel (%p1073) target = $region48
    $region47: #{resnet_block_forward.3} parent=5 // pred_region
      %s1076 = ssub.s32 %s11, 2
      // Predicated region
      $region49: #{resnet_block_forward.3} parent=47 // pred_check
        %p1077 = pneg %p155
      $region50: #{resnet_block_forward.3} parent=47 // pred_check_branch
        %1079 = sbr.rel (%p1077) target = $region52
      $region51: #{resnet_block_forward.3} parent=47 // pred_region
        %p1080 = scmp.lt.s32.totalorder %s17, 1
        %s1081 = scalar_select %p1080, %s17, 1
        %s1082 = smul.addr %s1081, 8
        %s1083 = smul.addr %s1082, 8
        %s1084 = scalar_lea.vmem %s5, %s1083
      $region52: #{resnet_block_forward.3} parent=47 // pred_fallthru
        _
    $region48: #{resnet_block_forward.3} parent=5 // pred_fallthru
      _
  $region6: #{resnet_block_forward.3} parent=0 // loop_footer
    %s15 = sadd.s32 1, %s11
  $region7: #{resnet_block_forward.3} parent=0 // loop_footer_branch
    %10 = sbr.rel target = $region3
  $region8: #{resnet_block_forward.3} parent=0 // loop_exit
    _

</llo_original>
